<compile_context>
chip_gen: v7x
topology: tpu7x:2x2x1
jax: 0.10.0
libtpu: 0.0.40
codegen_flags: <defaults>
</compile_context>

<pallas_src>
import jax
import jax.numpy as jnp
from jax.experimental import pallas as pl
from jax.experimental.pallas import tpu as pltpu


def _silu(x):
    return x * jax.nn.sigmoid(x)


def _round_up(x, m):
    return ((x + m - 1) // m) * m


def _choose_bm(B):
    """Batch tile: fill the MXU rows, and give >=2 grid steps when possible."""
    Bp = _round_up(B, 8)
    if Bp >= 1024:
        return 512
    if Bp >= 256:
        return 128
    if Bp >= 32 and (Bp // 2) % 8 == 0:
        return Bp // 2          # 2 grid steps -> megacore can split the batch
    return Bp


def condition_net_kernel(vec_ref, mask_ref, null_ref,
                         w1_ref, b1_ref, w2_ref, b2_ref, w3_ref, b3_ref,
                         out_ref):
    # Element-wise path in f32 (v5e VPU/EUP have no bf16 support).
    v = vec_ref[...].astype(jnp.float32)          # (bm, in_p)
    m = mask_ref[...].astype(jnp.float32)         # (bm, 1) broadcasts over in_p
    null = null_ref[...].astype(jnp.float32)      # (1, in_p)

    # objs = masks*vectors + (1-masks)*null  ==  null + masks*(vectors - null)
    objs = null + m * (v - null)

    wdt = w1_ref.dtype                            # matmul input dtype (bf16)

    # Linear(in_dim, 512) + SiLU
    h = jnp.dot(objs.astype(wdt), w1_ref[...],
                preferred_element_type=jnp.float32) + b1_ref[...]
    h = _silu(h)
    # Linear(512, 512) + SiLU
    h = jnp.dot(h.astype(wdt), w2_ref[...],
                preferred_element_type=jnp.float32) + b2_ref[...]
    h = _silu(h)
    # Linear(512, out_dim)
    out = jnp.dot(h.astype(wdt), w3_ref[...],
                  preferred_element_type=jnp.float32) + b3_ref[...]

    out_ref[...] = out.astype(out_ref.dtype)


def nsp_vector_condition_net(vectors, masks, params, *, bm=None,
                             matmul_dtype=jnp.bfloat16):
    """vectors: [B, in_dim], masks: [B, 1]  ->  [B, 1, out_dim]"""
    B, in_dim = vectors.shape
    null, w1, b1, w2, b2, w3, b3 = (params["null"], params["w1"], params["b1"],
                                    params["w2"], params["b2"], params["w3"],
                                    params["b3"])
    hidden = w1.shape[1]
    out_dim = w3.shape[1]

    if bm is None:
        bm = _choose_bm(B)
    Bp = _round_up(B, bm)                 # batch padded to a whole number of tiles
    in_p = _round_up(in_dim, 128)         # lane-dense K for the first matmul
    out_p = _round_up(out_dim, 128)       # lane-dense output -> unmasked vst

    def pad_to(x, shape):
        return jnp.pad(x, tuple((0, t - s) for s, t in zip(x.shape, shape)))

    vec_p = pad_to(vectors, (Bp, in_p))
    mask_p = pad_to(masks, (Bp, 1))
    null_p = pad_to(null, (1, in_p))
    # Weights in bf16: half the HBM->VMEM DMA bytes, MXU-native input dtype.
    # Zero-padded rows/cols contribute exactly zero to the matmuls.
    w1_p = pad_to(w1, (in_p, hidden)).astype(matmul_dtype)
    w2_p = w2.astype(matmul_dtype)
    w3_p = pad_to(w3, (hidden, out_p)).astype(matmul_dtype)
    # Biases stay f32: the bias add / SiLU run in f32 on the VPU/EUP.
    b1_p = b1.astype(jnp.float32)
    b2_p = b2.astype(jnp.float32)
    b3_p = pad_to(b3, (1, out_p)).astype(jnp.float32)

    wbytes = w1_p.dtype.itemsize
    xbytes = vectors.dtype.itemsize
    cost = pl.CostEstimate(
        flops=2 * Bp * (in_p * hidden + hidden * hidden + hidden * out_p),
        transcendentals=2 * Bp * hidden,                    # two SiLU layers
        bytes_accessed=(w1_p.size + w2_p.size + w3_p.size) * wbytes
        + (b1_p.size + b2_p.size + b3_p.size) * 4
        + (vec_p.size + mask_p.size + null_p.size) * xbytes
        + Bp * out_p * xbytes,
    )

    out = pl.pallas_call(
        condition_net_kernel,
        out_shape=jax.ShapeDtypeStruct((Bp, out_p), vectors.dtype),
        grid_spec=pltpu.PrefetchScalarGridSpec(
            num_scalar_prefetch=0,
            grid=(Bp // bm,),
            in_specs=[
                pl.BlockSpec((bm, in_p), lambda i: (i, 0)),        # vectors
                pl.BlockSpec((bm, 1), lambda i: (i, 0)),           # masks
                pl.BlockSpec((1, in_p), lambda i: (0, 0)),         # null_features
                pl.BlockSpec((in_p, hidden), lambda i: (0, 0)),    # W1 (bf16)
                pl.BlockSpec((1, hidden), lambda i: (0, 0)),       # b1 (f32)
                pl.BlockSpec((hidden, hidden), lambda i: (0, 0)),  # W2 (bf16)
                pl.BlockSpec((1, hidden), lambda i: (0, 0)),       # b2 (f32)
                pl.BlockSpec((hidden, out_p), lambda i: (0, 0)),   # W3 (bf16)
                pl.BlockSpec((1, out_p), lambda i: (0, 0)),        # b3 (f32)
            ],
            out_specs=pl.BlockSpec((bm, out_p), lambda i: (i, 0)),
        ),
        compiler_params=pltpu.CompilerParams(
            dimension_semantics=("parallel",)),
        cost_estimate=cost,
    )(vec_p, mask_p, null_p, w1_p, b1_p, w2_p, b2_p, w3_p, b3_p)

    # strip padding, then .unsqueeze(1)
    return out[:B, :out_dim].reshape(B, 1, out_dim)


def init_params(key, in_dim, out_dim, hidden=512, dtype=jnp.float32):
    """Deterministic synthetic init (shapes match the PyTorch module)."""
    ks = jax.random.split(key, 6)

    def lin(kw, kb, fan_in, fan_out):
        # weights stored pre-transposed: [fan_in, fan_out]
        w = jax.random.normal(kw, (fan_in, fan_out), dtype) * (1.0 / jnp.sqrt(fan_in))
        b = jax.random.normal(kb, (1, fan_out), dtype) * 0.01
        return w, b

    w1, b1 = lin(ks[0], ks[1], in_dim, hidden)
    w2, b2 = lin(ks[2], ks[3], hidden, hidden)
    w3, b3 = lin(ks[4], ks[5], hidden, out_dim)
    null = jnp.zeros((1, in_dim), dtype)   # nn.Parameter(torch.zeros([in_dim]))
    return dict(null=null, w1=w1, b1=b1, w2=w2, b2=b2, w3=w3, b3=b3)


def _reference(vectors, masks, p, matmul_dtype=jnp.bfloat16):
    """Pure-JAX reference with the same bf16-matmul / f32-accumulate recipe."""
    objs = masks * vectors + (1.0 - masks) * p["null"]

    def mm(x, w):
        return jnp.dot(x.astype(matmul_dtype), w.astype(matmul_dtype),
                       preferred_element_type=jnp.float32)

    h = _silu(mm(objs, p["w1"]) + p["b1"])
    h = _silu(mm(h, p["w2"]) + p["b2"])
    return (mm(h, p["w3"]) + p["b3"])[:, None, :]


if __name__ == "__main__":
    key = jax.random.PRNGKey(0)
    k_param, k_vec, k_mask = jax.random.split(key, 3)

    B, in_dim, out_dim = 8, 32, 64   # hidden=512 is fixed by the module
    params = init_params(k_param, in_dim, out_dim)

    vectors = jax.random.normal(k_vec, (B, in_dim), jnp.float32)
    masks = (jax.random.uniform(k_mask, (B, 1)) > 0.5).astype(jnp.float32)

    out = nsp_vector_condition_net(vectors, masks, params)
    out = jax.block_until_ready(out)

    ref = _reference(vectors, masks, params)
    assert out.shape == (B, 1, out_dim)
    assert bool(jnp.all(jnp.isfinite(out)))
    assert jnp.allclose(out, ref, atol=1e-2, rtol=1e-2)
    print("KERNEL_OK")
</pallas_src>

<mosaic_0001>
module attributes {stable_mosaic.version = 11 : i64} {
  func.func @condition_net_kernel(%arg0: i32, %arg1: memref<8x128xf32, #tpu.memory_space<vmem>>, %arg2: memref<8x1xf32, #tpu.memory_space<vmem>>, %arg3: memref<1x128xf32, #tpu.memory_space<vmem>>, %arg4: memref<128x512xbf16, #tpu.memory_space<vmem>>, %arg5: memref<1x512xf32, #tpu.memory_space<vmem>>, %arg6: memref<512x512xbf16, #tpu.memory_space<vmem>>, %arg7: memref<1x512xf32, #tpu.memory_space<vmem>>, %arg8: memref<512x128xbf16, #tpu.memory_space<vmem>>, %arg9: memref<1x128xf32, #tpu.memory_space<vmem>>, %arg10: memref<8x128xf32, #tpu.memory_space<vmem>>) attributes {dimension_semantics = [#tpu.dimension_semantics<parallel>], iteration_bounds = array<i64: 1>, scalar_prefetch = 0 : i64, scratch_operands = 0 : i64, tpu.core_type = #tpu.core_type<tc>, window_params = [{transform_indices = @transform_0, window_bounds = array<i64: 8, 128>}, {transform_indices = @transform_1, window_bounds = array<i64: 8, 1>}, {pipeline_mode = #tpu.pipeline_mode<synchronous>, transform_indices = @transform_2, window_bounds = array<i64: 1, 128>}, {pipeline_mode = #tpu.pipeline_mode<synchronous>, transform_indices = @transform_3, window_bounds = array<i64: 128, 512>}, {pipeline_mode = #tpu.pipeline_mode<synchronous>, transform_indices = @transform_4, window_bounds = array<i64: 1, 512>}, {pipeline_mode = #tpu.pipeline_mode<synchronous>, transform_indices = @transform_5, window_bounds = array<i64: 512, 512>}, {pipeline_mode = #tpu.pipeline_mode<synchronous>, transform_indices = @transform_6, window_bounds = array<i64: 1, 512>}, {pipeline_mode = #tpu.pipeline_mode<synchronous>, transform_indices = @transform_7, window_bounds = array<i64: 512, 128>}, {pipeline_mode = #tpu.pipeline_mode<synchronous>, transform_indices = @transform_8, window_bounds = array<i64: 1, 128>}, {transform_indices = @transform_9, window_bounds = array<i64: 8, 128>}]} {
    %c0 = arith.constant 0 : index
    %c0_0 = arith.constant 0 : index
    %0 = vector.load %arg1[%c0, %c0_0] : memref<8x128xf32, #tpu.memory_space<vmem>>, vector<8x128xf32>
    %c0_1 = arith.constant 0 : index
    %c0_2 = arith.constant 0 : index
    %1 = vector.load %arg2[%c0_1, %c0_2] : memref<8x1xf32, #tpu.memory_space<vmem>>, vector<8x1xf32>
    %c0_3 = arith.constant 0 : index
    %c0_4 = arith.constant 0 : index
    %2 = vector.load %arg3[%c0_3, %c0_4] : memref<1x128xf32, #tpu.memory_space<vmem>>, vector<1x128xf32>
    %3 = vector.broadcast %2 : vector<1x128xf32> to vector<8x128xf32>
    %4 = arith.subf %0, %3 : vector<8x128xf32>
    %5 = vector.broadcast %1 : vector<8x1xf32> to vector<8x128xf32>
    %6 = arith.mulf %5, %4 : vector<8x128xf32>
    %7 = vector.broadcast %2 : vector<1x128xf32> to vector<8x128xf32>
    %8 = arith.addf %7, %6 : vector<8x128xf32>
    %9 = arith.truncf %8 : vector<8x128xf32> to vector<8x128xbf16>
    %c0_5 = arith.constant 0 : index
    %c0_6 = arith.constant 0 : index
    %10 = vector.load %arg4[%c0_5, %c0_6] : memref<128x512xbf16, #tpu.memory_space<vmem>>, vector<128x512xbf16>
    %cst = arith.constant dense<0.000000e+00> : vector<8x512xf32>
    %11 = tpu.matmul %9, %10, %cst {dimension_numbers = #tpu.dot_dimension_numbers<[1], [0], [0], [1], [0, 0, 1, 1], [], []>} : vector<8x128xbf16>, vector<128x512xbf16>, vector<8x512xf32> -> vector<8x512xf32>
    %c0_7 = arith.constant 0 : index
    %c0_8 = arith.constant 0 : index
    %12 = vector.load %arg5[%c0_7, %c0_8] : memref<1x512xf32, #tpu.memory_space<vmem>>, vector<1x512xf32>
    %13 = vector.broadcast %12 : vector<1x512xf32> to vector<8x512xf32>
    %14 = arith.addf %11, %13 : vector<8x512xf32>
    %15 = arith.negf %14 : vector<8x512xf32>
    %16 = math.exp %15 : vector<8x512xf32>
    %cst_9 = arith.constant 1.000000e+00 : f32
    %17 = vector.broadcast %cst_9 : f32 to vector<8x512xf32>
    %18 = arith.addf %17, %16 : vector<8x512xf32>
    %19 = arith.divf %17, %18 : vector<8x512xf32>
    %20 = arith.mulf %14, %19 : vector<8x512xf32>
    %21 = arith.truncf %20 : vector<8x512xf32> to vector<8x512xbf16>
    %c0_10 = arith.constant 0 : index
    %c0_11 = arith.constant 0 : index
    %22 = vector.load %arg6[%c0_10, %c0_11] : memref<512x512xbf16, #tpu.memory_space<vmem>>, vector<512x512xbf16>
    %cst_12 = arith.constant dense<0.000000e+00> : vector<8x512xf32>
    %23 = tpu.matmul %21, %22, %cst_12 {dimension_numbers = #tpu.dot_dimension_numbers<[1], [0], [0], [1], [0, 0, 1, 1], [], []>} : vector<8x512xbf16>, vector<512x512xbf16>, vector<8x512xf32> -> vector<8x512xf32>
    %c0_13 = arith.constant 0 : index
    %c0_14 = arith.constant 0 : index
    %24 = vector.load %arg7[%c0_13, %c0_14] : memref<1x512xf32, #tpu.memory_space<vmem>>, vector<1x512xf32>
    %25 = vector.broadcast %24 : vector<1x512xf32> to vector<8x512xf32>
    %26 = arith.addf %23, %25 : vector<8x512xf32>
    %27 = arith.negf %26 : vector<8x512xf32>
    %28 = math.exp %27 : vector<8x512xf32>
    %cst_15 = arith.constant 1.000000e+00 : f32
    %29 = vector.broadcast %cst_15 : f32 to vector<8x512xf32>
    %30 = arith.addf %29, %28 : vector<8x512xf32>
    %31 = arith.divf %29, %30 : vector<8x512xf32>
    %32 = arith.mulf %26, %31 : vector<8x512xf32>
    %33 = arith.truncf %32 : vector<8x512xf32> to vector<8x512xbf16>
    %c0_16 = arith.constant 0 : index
    %c0_17 = arith.constant 0 : index
    %34 = vector.load %arg8[%c0_16, %c0_17] : memref<512x128xbf16, #tpu.memory_space<vmem>>, vector<512x128xbf16>
    %cst_18 = arith.constant dense<0.000000e+00> : vector<8x128xf32>
    %35 = tpu.matmul %33, %34, %cst_18 {dimension_numbers = #tpu.dot_dimension_numbers<[1], [0], [0], [1], [0, 0, 1, 1], [], []>} : vector<8x512xbf16>, vector<512x128xbf16>, vector<8x128xf32> -> vector<8x128xf32>
    %c0_19 = arith.constant 0 : index
    %c0_20 = arith.constant 0 : index
    %36 = vector.load %arg9[%c0_19, %c0_20] : memref<1x128xf32, #tpu.memory_space<vmem>>, vector<1x128xf32>
    %37 = vector.broadcast %36 : vector<1x128xf32> to vector<8x128xf32>
    %38 = arith.addf %35, %37 : vector<8x128xf32>
    %c0_21 = arith.constant 0 : index
    %c0_22 = arith.constant 0 : index
    %39 = vector.load %arg10[%c0_21, %c0_22] : memref<8x128xf32, #tpu.memory_space<vmem>>, vector<8x128xf32>
    tpu.vector_store %arg10[%c0_21, %c0_22], %38 {strides = array<i32>} : memref<8x128xf32, #tpu.memory_space<vmem>>, vector<8x128xf32>,
    return
  }
  func.func @transform_0(%arg0: i32) -> (i32, i32) {
    %c0_i32 = arith.constant 0 : i32
    %c0_i32_0 = arith.constant 0 : i32
    return %arg0, %c0_i32 : i32, i32
  }
  func.func @transform_1(%arg0: i32) -> (i32, i32) {
    %c0_i32 = arith.constant 0 : i32
    %c0_i32_0 = arith.constant 0 : i32
    return %arg0, %c0_i32 : i32, i32
  }
  func.func @transform_2(%arg0: i32) -> (i32, i32) {
    %c0_i32 = arith.constant 0 : i32
    %c0_i32_0 = arith.constant 0 : i32
    %c0_i32_1 = arith.constant 0 : i32
    return %c0_i32, %c0_i32_0 : i32, i32
  }
  func.func @transform_3(%arg0: i32) -> (i32, i32) {
    %c0_i32 = arith.constant 0 : i32
    %c0_i32_0 = arith.constant 0 : i32
    %c0_i32_1 = arith.constant 0 : i32
    return %c0_i32, %c0_i32_0 : i32, i32
  }
  func.func @transform_4(%arg0: i32) -> (i32, i32) {
    %c0_i32 = arith.constant 0 : i32
    %c0_i32_0 = arith.constant 0 : i32
    %c0_i32_1 = arith.constant 0 : i32
    return %c0_i32, %c0_i32_0 : i32, i32
  }
  func.func @transform_5(%arg0: i32) -> (i32, i32) {
    %c0_i32 = arith.constant 0 : i32
    %c0_i32_0 = arith.constant 0 : i32
    %c0_i32_1 = arith.constant 0 : i32
    return %c0_i32, %c0_i32_0 : i32, i32
  }
  func.func @transform_6(%arg0: i32) -> (i32, i32) {
    %c0_i32 = arith.constant 0 : i32
    %c0_i32_0 = arith.constant 0 : i32
    %c0_i32_1 = arith.constant 0 : i32
    return %c0_i32, %c0_i32_0 : i32, i32
  }
  func.func @transform_7(%arg0: i32) -> (i32, i32) {
    %c0_i32 = arith.constant 0 : i32
    %c0_i32_0 = arith.constant 0 : i32
    %c0_i32_1 = arith.constant 0 : i32
    return %c0_i32, %c0_i32_0 : i32, i32
  }
  func.func @transform_8(%arg0: i32) -> (i32, i32) {
    %c0_i32 = arith.constant 0 : i32
    %c0_i32_0 = arith.constant 0 : i32
    %c0_i32_1 = arith.constant 0 : i32
    return %c0_i32, %c0_i32_0 : i32, i32
  }
  func.func @transform_9(%arg0: i32) -> (i32, i32) {
    %c0_i32 = arith.constant 0 : i32
    %c0_i32_0 = arith.constant 0 : i32
    return %arg0, %c0_i32 : i32, i32
  }
}

</mosaic_0001>

<llo_original>
// kernel: tpu_custom_call.1
$region0: #{tpu_custom_call.1}
  #allocation0 [shape = 'u32[]', space=smem, size = 0x4, offset = 0x4, fixed_abs, tag = 'smem constant byte address 0x4 - core index']
  #allocation1 [shape = 'u32[144,128]{1,0:T(1,128)}', space=vmem, size = 0x12000, scoped, tag = 'internal scratch']
  %s0 = inlined_call_operand.vmem [shape: f32[8,128], index: 0, kind: input, shape index: {}]
  %s1 = inlined_call_operand.vmem [shape: f32[8,1], index: 1, kind: input, shape index: {}]
  %s2 = inlined_call_operand.hbm [shape: f32[1,128], index: 2, kind: input, shape index: {}]
  %s3 = inlined_call_operand.hbm [shape: bf16[128,512], index: 3, kind: input, shape index: {}]
  %s4 = inlined_call_operand.vmem [shape: f32[1,512], index: 4, kind: input, shape index: {}]
  %s5 = inlined_call_operand.hbm [shape: bf16[512,512], index: 5, kind: input, shape index: {}]
  %s6 = inlined_call_operand.vmem [shape: f32[1,512], index: 6, kind: input, shape index: {}]
  %s7 = inlined_call_operand.hbm [shape: bf16[512,128], index: 7, kind: input, shape index: {}]
  %s8 = inlined_call_operand.vmem [shape: f32[1,128], index: 8, kind: input, shape index: {}]
  %s9 = inlined_call_operand.hbm [shape: f32[8,128], index: 9, kind: output, shape index: {}]
  %s10 = sld [smem:[#allocation0]]
  $region62: #{tpu_custom_call.1} parent=0
    _
  %s12 = ssub.s32 1, %s10
  %s13 = scalar_select 0, %s12, %s10
  $region1: #{tpu_custom_call.1} parent=0
    #allocation2 [shape = 'u8[512]{0}', space=vmem, size = 0x400, scoped, tag = 'input window, operand 2, single buffered']
    #allocation3 [shape = 's32[1]{0}', space=sflag, size = 0x4, scoped, tag = 'scoped memory for tpu_custom_call.1']
    #allocation4 [shape = 's32[1]{0}', space=sflag, size = 0x4, scoped, tag = 'scoped memory for tpu_custom_call.1']
    #allocation5 [shape = 'u8[131072]{0}', space=vmem, size = 0x20000, scoped, tag = 'input window, operand 3, single buffered']
    #allocation6 [shape = 's32[1]{0}', space=sflag, size = 0x4, scoped, tag = 'scoped memory for tpu_custom_call.1']
    #allocation7 [shape = 'u8[524288]{0}', space=vmem, size = 0x80000, scoped, tag = 'input window, operand 5, single buffered']
    #allocation8 [shape = 'u8[131072]{0}', space=vmem, size = 0x20000, scoped, tag = 'input window, operand 7, single buffered']
    #allocation9 [shape = 's32[1]{0}', space=sflag, size = 0x4, scoped, tag = 'scoped memory for tpu_custom_call.1']
    #allocation10 [shape = 'u8[4096]{0}', space=vmem, size = 0x1000, scoped, tag = 'output window, operand 0, single buffered']
    %14 = vsyncpa [#allocation3], 0
    %15 = vsyncpa [#allocation6], 0
    %16 = vsyncpa [#allocation9], 0
    %17 = vsyncpa [#allocation4], 0
    // Predicated region
    $region2: #{tpu_custom_call.1} parent=1 // pred_check
      _
    $region3: #{tpu_custom_call.1} parent=1 // pred_check_branch
      %19 = sbr.rel (0) target = $region5
    $region4: #{tpu_custom_call.1} parent=1 // pred_region
      _
    $region5: #{tpu_custom_call.1} parent=1 // pred_fallthru
      _
    // Predicated region
    $region6: #{tpu_custom_call.1} parent=1 // pred_check
      _
    $region7: #{tpu_custom_call.1} parent=1 // pred_check_branch
      %21 = sbr.rel (0) target = $region9
    $region8: #{tpu_custom_call.1} parent=1 // pred_region
      _
    $region9: #{tpu_custom_call.1} parent=1 // pred_fallthru
      _
    // Predicated region
    $region10: #{tpu_custom_call.1} parent=1 // pred_check
      _
    $region11: #{tpu_custom_call.1} parent=1 // pred_check_branch
      %23 = sbr.rel (0) target = $region13
    $region12: #{tpu_custom_call.1} parent=1 // pred_region
      %s25 = ssub.s32 16, 16
      %26 = vsyncadd [#allocation3], %s25
      %s28 = sshll.u32 [#allocation2], 4
      %s29 = int_to_ptr.vmem [resolvable:$true] %s28
      %31 = dma.hbm_to_vmem [thread:$0]  %s2, 16, %s29, [#allocation3]
    $region13: #{tpu_custom_call.1} parent=1 // pred_fallthru
      _
    // Predicated region
    $region14: #{tpu_custom_call.1} parent=1 // pred_check
      _
    $region15: #{tpu_custom_call.1} parent=1 // pred_check_branch
      %33 = sbr.rel (0) target = $region17
    $region16: #{tpu_custom_call.1} parent=1 // pred_region
      %s35 = ssub.s32 4096, 4096
      %36 = vsyncadd [#allocation6], %s35
      %s37 = sshll.u32 [#allocation5], 4
      %s38 = int_to_ptr.vmem [resolvable:$true] %s37
      %43 = dma.hbm_to_vmem [thread:$0]  %s3, 4096, %s38, [#allocation6], 256, 256, 16
    $region17: #{tpu_custom_call.1} parent=1 // pred_fallthru
      _
    // Predicated region
    $region18: #{tpu_custom_call.1} parent=1 // pred_check
      _
    $region19: #{tpu_custom_call.1} parent=1 // pred_check_branch
      %45 = sbr.rel (0) target = $region21
    $region20: #{tpu_custom_call.1} parent=1 // pred_region
      _
    $region21: #{tpu_custom_call.1} parent=1 // pred_fallthru
      _
    // Predicated region
    $region22: #{tpu_custom_call.1} parent=1 // pred_check
      _
    $region23: #{tpu_custom_call.1} parent=1 // pred_check_branch
      %47 = sbr.rel (0) target = $region25
    $region24: #{tpu_custom_call.1} parent=1 // pred_region
      %s49 = ssub.s32 16384, 16384
      %50 = vsyncadd [#allocation6], %s49
      %s51 = sshll.u32 [#allocation7], 4
      %s52 = int_to_ptr.vmem [resolvable:$true] %s51
      %57 = dma.hbm_to_vmem [thread:$0]  %s5, 16384, %s52, [#allocation6], 256, 256, 16
    $region25: #{tpu_custom_call.1} parent=1 // pred_fallthru
      _
    // Predicated region
    $region26: #{tpu_custom_call.1} parent=1 // pred_check
      _
    $region27: #{tpu_custom_call.1} parent=1 // pred_check_branch
      %59 = sbr.rel (0) target = $region29
    $region28: #{tpu_custom_call.1} parent=1 // pred_region
      _
    $region29: #{tpu_custom_call.1} parent=1 // pred_fallthru
      _
    // Predicated region
    $region30: #{tpu_custom_call.1} parent=1 // pred_check
      _
    $region31: #{tpu_custom_call.1} parent=1 // pred_check_branch
      %61 = sbr.rel (0) target = $region33
    $region32: #{tpu_custom_call.1} parent=1 // pred_region
      %s63 = ssub.s32 4096, 4096
      %64 = vsyncadd [#allocation9], %s63
      %s65 = sshll.u32 [#allocation8], 4
      %s66 = int_to_ptr.vmem [resolvable:$true] %s65
      %71 = dma.hbm_to_vmem [thread:$0]  %s7, 4096, %s66, [#allocation9], 64, 64, 4
    $region33: #{tpu_custom_call.1} parent=1 // pred_fallthru
      _
    // Predicated region
    $region34: #{tpu_custom_call.1} parent=1 // pred_check
      _
    $region35: #{tpu_custom_call.1} parent=1 // pred_check_branch
      %73 = sbr.rel (0) target = $region37
    $region36: #{tpu_custom_call.1} parent=1 // pred_region
      _
    $region37: #{tpu_custom_call.1} parent=1 // pred_fallthru
      _
    // Predicated region
    $region38: #{tpu_custom_call.1} parent=1 // pred_check
      _
    $region39: #{tpu_custom_call.1} parent=1 // pred_check_branch
      %75 = sbr.rel (0) target = $region41
    $region40: #{tpu_custom_call.1} parent=1 // pred_region
      %76 = dma.done [#allocation3], 16
    $region41: #{tpu_custom_call.1} parent=1 // pred_fallthru
      _
    // Predicated region
    $region42: #{tpu_custom_call.1} parent=1 // pred_check
      _
    $region43: #{tpu_custom_call.1} parent=1 // pred_check_branch
      %78 = sbr.rel (0) target = $region45
    $region44: #{tpu_custom_call.1} parent=1 // pred_region
      %79 = dma.done [#allocation6], 4096
    $region45: #{tpu_custom_call.1} parent=1 // pred_fallthru
      _
    // Predicated region
    $region46: #{tpu_custom_call.1} parent=1 // pred_check
      _
    $region47: #{tpu_custom_call.1} parent=1 // pred_check_branch
      %81 = sbr.rel (0) target = $region49
    $region48: #{tpu_custom_call.1} parent=1 // pred_region
      %82 = dma.done [#allocation6], 16384
    $region49: #{tpu_custom_call.1} parent=1 // pred_fallthru
      _
    // Predicated region
    $region50: #{tpu_custom_call.1} parent=1 // pred_check
      _
    $region51: #{tpu_custom_call.1} parent=1 // pred_check_branch
      %84 = sbr.rel (0) target = $region53
    $region52: #{tpu_custom_call.1} parent=1 // pred_region
      %85 = dma.done [#allocation9], 4096
    $region53: #{tpu_custom_call.1} parent=1 // pred_fallthru
      _
    %v87 = vld [vmem:[%s0] sm:$0xff]
    %v88 = vld [vmem:[%s1] sm:$0xff]
    %v89 = vld [vmem:[#allocation2] sm:$0x1]
    %v91 = vlaneseq
    %v92 = vshrl.u32 %v91, 7
    %v93 = vsub.s32 0, %v92
    %v94 = vrot.slane %v89, %v93
    %v96 = vsub.f32 %v87, %v94
    %98 = vset.pattern.permute.xlu0 0
    %99 = vperm.xlu0 %98, %v88
    %v100 = vpop.permute.xlu0 %99
    %v102 = vmul.f32 %v100, %v96
    %v103 = vadd.f32 %v94, %v102
    %v104 = vpack.c.bf16 %v103, %v103
    %v105 = vld [vmem:[#allocation5] sm:$0xff]
    %v106 = vld [vmem:[#allocation5 + $0x8] sm:$0xff]
    %v107 = vld [vmem:[#allocation5 + $0x10] sm:$0xff]
    %v108 = vld [vmem:[#allocation5 + $0x18] sm:$0xff]
    %v109 = vld [vmem:[#allocation5 + $0x20] sm:$0xff]
    %v110 = vld [vmem:[#allocation5 + $0x28] sm:$0xff]
    %v111 = vld [vmem:[#allocation5 + $0x30] sm:$0xff]
    %v112 = vld [vmem:[#allocation5 + $0x38] sm:$0xff]
    %v113 = vld [vmem:[#allocation5 + $0x40] sm:$0xff]
    %v114 = vld [vmem:[#allocation5 + $0x48] sm:$0xff]
    %v115 = vld [vmem:[#allocation5 + $0x50] sm:$0xff]
    %v116 = vld [vmem:[#allocation5 + $0x58] sm:$0xff]
    %v117 = vld [vmem:[#allocation5 + $0x60] sm:$0xff]
    %v118 = vld [vmem:[#allocation5 + $0x68] sm:$0xff]
    %v119 = vld [vmem:[#allocation5 + $0x70] sm:$0xff]
    %v120 = vld [vmem:[#allocation5 + $0x78] sm:$0xff]
    %v121 = vld [vmem:[#allocation5 + $0x80] sm:$0xff]
    %v122 = vld [vmem:[#allocation5 + $0x88] sm:$0xff]
    %v123 = vld [vmem:[#allocation5 + $0x90] sm:$0xff]
    %v124 = vld [vmem:[#allocation5 + $0x98] sm:$0xff]
    %v125 = vld [vmem:[#allocation5 + $0xa0] sm:$0xff]
    %v126 = vld [vmem:[#allocation5 + $0xa8] sm:$0xff]
    %v127 = vld [vmem:[#allocation5 + $0xb0] sm:$0xff]
    %v128 = vld [vmem:[#allocation5 + $0xb8] sm:$0xff]
    %v129 = vld [vmem:[#allocation5 + $0xc0] sm:$0xff]
    %v130 = vld [vmem:[#allocation5 + $0xc8] sm:$0xff]
    %v131 = vld [vmem:[#allocation5 + $0xd0] sm:$0xff]
    %v132 = vld [vmem:[#allocation5 + $0xd8] sm:$0xff]
    %v133 = vld [vmem:[#allocation5 + $0xe0] sm:$0xff]
    %v134 = vld [vmem:[#allocation5 + $0xe8] sm:$0xff]
    %v135 = vld [vmem:[#allocation5 + $0xf0] sm:$0xff]
    %v136 = vld [vmem:[#allocation5 + $0xf8] sm:$0xff]
    %v137 = vld [vmem:[%s4] sm:$0xf]
    %v139 = vlaneseq
    %v140 = vshrl.u32 %v139, 7
    %v141 = vsub.s32 0, %v140
    %v142 = vrot.slane %v137, %v141
    %v143 = vlaneseq
    %v144 = vshrl.u32 %v143, 7
    %v145 = vsub.s32 1, %v144
    %v146 = vrot.slane %v137, %v145
    %v147 = vlaneseq
    %v148 = vshrl.u32 %v147, 7
    %v149 = vsub.s32 2, %v148
    %v150 = vrot.slane %v137, %v149
    %v151 = vlaneseq
    %v152 = vshrl.u32 %v151, 7
    %v153 = vsub.s32 3, %v152
    %v154 = vrot.slane %v137, %v153
    %v191 = vunpack.c.l.b16 %v105
    %v192 = vunpack.c.h.b16 %v105
    %v193 = vunpack.c.l.b16 %v106
    %v194 = vunpack.c.h.b16 %v106
    %v195 = vunpack.c.l.b16 %v107
    %v196 = vunpack.c.h.b16 %v107
    %v197 = vunpack.c.l.b16 %v108
    %v198 = vunpack.c.h.b16 %v108
    %v199 = vunpack.c.l.b16 %v109
    %v200 = vunpack.c.h.b16 %v109
    %v201 = vunpack.c.l.b16 %v110
    %v202 = vunpack.c.h.b16 %v110
    %v203 = vunpack.c.l.b16 %v111
    %v204 = vunpack.c.h.b16 %v111
    %v205 = vunpack.c.l.b16 %v112
    %v206 = vunpack.c.h.b16 %v112
    %v207 = vunpack.c.l.b16 %v113
    %v208 = vunpack.c.h.b16 %v113
    %v209 = vunpack.c.l.b16 %v114
    %v210 = vunpack.c.h.b16 %v114
    %v211 = vunpack.c.l.b16 %v115
    %v212 = vunpack.c.h.b16 %v115
    %v213 = vunpack.c.l.b16 %v116
    %v214 = vunpack.c.h.b16 %v116
    %v215 = vunpack.c.l.b16 %v117
    %v216 = vunpack.c.h.b16 %v117
    %v217 = vunpack.c.l.b16 %v118
    %v218 = vunpack.c.h.b16 %v118
    %v219 = vunpack.c.l.b16 %v119
    %v220 = vunpack.c.h.b16 %v119
    %v221 = vunpack.c.l.b16 %v120
    %v222 = vunpack.c.h.b16 %v120
    %v223 = vunpack.c.l.b16 %v121
    %v224 = vunpack.c.h.b16 %v121
    %v225 = vunpack.c.l.b16 %v122
    %v226 = vunpack.c.h.b16 %v122
    %v227 = vunpack.c.l.b16 %v123
    %v228 = vunpack.c.h.b16 %v123
    %v229 = vunpack.c.l.b16 %v124
    %v230 = vunpack.c.h.b16 %v124
    %v231 = vunpack.c.l.b16 %v125
    %v232 = vunpack.c.h.b16 %v125
    %v233 = vunpack.c.l.b16 %v126
    %v234 = vunpack.c.h.b16 %v126
    %v235 = vunpack.c.l.b16 %v127
    %v236 = vunpack.c.h.b16 %v127
    %v237 = vunpack.c.l.b16 %v128
    %v238 = vunpack.c.h.b16 %v128
    %v239 = vunpack.c.l.b16 %v129
    %v240 = vunpack.c.h.b16 %v129
    %v241 = vunpack.c.l.b16 %v130
    %v242 = vunpack.c.h.b16 %v130
    %v243 = vunpack.c.l.b16 %v131
    %v244 = vunpack.c.h.b16 %v131
    %v245 = vunpack.c.l.b16 %v132
    %v246 = vunpack.c.h.b16 %v132
    %v247 = vunpack.c.l.b16 %v133
    %v248 = vunpack.c.h.b16 %v133
    %v249 = vunpack.c.l.b16 %v134
    %v250 = vunpack.c.h.b16 %v134
    %v251 = vunpack.c.l.b16 %v135
    %v252 = vunpack.c.h.b16 %v135
    %v253 = vunpack.c.l.b16 %v136
    %v254 = vunpack.c.h.b16 %v136
    %v255 = vpack.c.b16 %v195, %v191
    %v256 = vpack.c.b16 %v196, %v192
    %v257 = vpack.c.b16 %v197, %v193
    %v258 = vpack.c.b16 %v198, %v194
    %v259 = vpack.c.b16 %v203, %v199
    %v260 = vpack.c.b16 %v204, %v200
    %v261 = vpack.c.b16 %v205, %v201
    %v262 = vpack.c.b16 %v206, %v202
    %v263 = vpack.c.b16 %v211, %v207
    %v264 = vpack.c.b16 %v212, %v208
    %v265 = vpack.c.b16 %v213, %v209
    %v266 = vpack.c.b16 %v214, %v210
    %v267 = vpack.c.b16 %v219, %v215
    %v268 = vpack.c.b16 %v220, %v216
    %v269 = vpack.c.b16 %v221, %v217
    %v270 = vpack.c.b16 %v222, %v218
    %v271 = vpack.c.b16 %v227, %v223
    %v272 = vpack.c.b16 %v228, %v224
    %v273 = vpack.c.b16 %v229, %v225
    %v274 = vpack.c.b16 %v230, %v226
    %v275 = vpack.c.b16 %v235, %v231
    %v276 = vpack.c.b16 %v236, %v232
    %v277 = vpack.c.b16 %v237, %v233
    %v278 = vpack.c.b16 %v238, %v234
    %v279 = vpack.c.b16 %v243, %v239
    %v280 = vpack.c.b16 %v244, %v240
    %v281 = vpack.c.b16 %v245, %v241
    %v282 = vpack.c.b16 %v246, %v242
    %v283 = vpack.c.b16 %v251, %v247
    %v284 = vpack.c.b16 %v252, %v248
    %v285 = vpack.c.b16 %v253, %v249
    %v286 = vpack.c.b16 %v254, %v250
    %319 = vmatprep.subr.bf16.mxu0 %v256
    %320 = vmatpush1.bf16.msra.mxu0 %v255
    %321 = vmatprep.subr.bf16.mxu0 %v260
    %322 = vmatpush1.bf16.msra.mxu0 %v259
    %323 = vmatprep.subr.bf16.mxu0 %v264
    %324 = vmatpush1.bf16.msra.mxu0 %v263
    %325 = vmatprep.subr.bf16.mxu0 %v268
    %326 = vmatpush1.bf16.msra.mxu0 %v267
    %327 = vmatprep.subr.bf16.mxu0 %v272
    %328 = vmatpush1.bf16.msra.mxu0 %v271
    %329 = vmatprep.subr.bf16.mxu0 %v276
    %330 = vmatpush1.bf16.msra.mxu0 %v275
    %331 = vmatprep.subr.bf16.mxu0 %v280
    %332 = vmatpush1.bf16.msra.mxu0 %v279
    %333 = vmatprep.subr.bf16.mxu0 %v284
    %334 = vmatpush1.bf16.msra.mxu0 %v283
    %335 = vmatprep.subr.bf16.mxu0 0
    %336 = vmatpush1.bf16.msra.mxu0 0
    %337 = vmatprep.subr.bf16.mxu0 0
    %338 = vmatpush1.bf16.msra.mxu0 0
    %339 = vmatprep.subr.bf16.mxu0 0
    %340 = vmatpush1.bf16.msra.mxu0 0
    %341 = vmatprep.subr.bf16.mxu0 0
    %342 = vmatpush1.bf16.msra.mxu0 0
    %343 = vmatprep.subr.bf16.mxu0 0
    %344 = vmatpush1.bf16.msra.mxu0 0
    %345 = vmatprep.subr.bf16.mxu0 0
    %346 = vmatpush1.bf16.msra.mxu0 0
    %347 = vmatprep.subr.bf16.mxu0 0
    %348 = vmatpush1.bf16.msra.mxu0 0
    %349 = vmatprep.subr.bf16.mxu0 0
    %350 = vmatpush1.bf16.msra.mxu0 0
    %351 = vmatprep.mubr.bf16.mxu0 0
    %352 = vmatmul.mubr.bf16.gmra.mrb[0].mxu0 %v104
    %v353 = vpop.f32.mrb[0].mxu0
    %v354 = vadd.f32 %v142, %v353
    %v355 = vpop.f32.mrb[0].mxu0
    %v356 = vadd.f32 %v146, %v355
    %v357 = vpop.f32.mrb[0].mxu0
    %v358 = vpop.f32.mrb[0].mxu0
    %359 = vdwg.mxu0
    %360 = vmatprep.subr.bf16.mxu0 %v258
    %361 = vmatpush1.bf16.msra.mxu0 %v257
    %362 = vmatprep.subr.bf16.mxu0 %v262
    %363 = vmatpush1.bf16.msra.mxu0 %v261
    %364 = vmatprep.subr.bf16.mxu0 %v266
    %365 = vmatpush1.bf16.msra.mxu0 %v265
    %366 = vmatprep.subr.bf16.mxu0 %v270
    %367 = vmatpush1.bf16.msra.mxu0 %v269
    %368 = vmatprep.subr.bf16.mxu0 %v274
    %369 = vmatpush1.bf16.msra.mxu0 %v273
    %370 = vmatprep.subr.bf16.mxu0 %v278
    %371 = vmatpush1.bf16.msra.mxu0 %v277
    %372 = vmatprep.subr.bf16.mxu0 %v282
    %373 = vmatpush1.bf16.msra.mxu0 %v281
    %374 = vmatprep.subr.bf16.mxu0 %v286
    %375 = vmatpush1.bf16.msra.mxu0 %v285
    %376 = vmatprep.subr.bf16.mxu0 0
    %377 = vmatpush1.bf16.msra.mxu0 0
    %378 = vmatprep.subr.bf16.mxu0 0
    %379 = vmatpush1.bf16.msra.mxu0 0
    %380 = vmatprep.subr.bf16.mxu0 0
    %381 = vmatpush1.bf16.msra.mxu0 0
    %382 = vmatprep.subr.bf16.mxu0 0
    %383 = vmatpush1.bf16.msra.mxu0 0
    %384 = vmatprep.subr.bf16.mxu0 0
    %385 = vmatpush1.bf16.msra.mxu0 0
    %386 = vmatprep.subr.bf16.mxu0 0
    %387 = vmatpush1.bf16.msra.mxu0 0
    %388 = vmatprep.subr.bf16.mxu0 0
    %389 = vmatpush1.bf16.msra.mxu0 0
    %390 = vmatprep.subr.bf16.mxu0 0
    %391 = vmatpush1.bf16.msra.mxu0 0
    %392 = vmatprep.mubr.bf16.mxu0 0
    %393 = vmatmul.mubr.bf16.gmra.mrb[0].mxu0 %v104
    %v394 = vpop.f32.mrb[0].mxu0
    %v395 = vadd.f32 %v150, %v394
    %v396 = vpop.f32.mrb[0].mxu0
    %v397 = vadd.f32 %v154, %v396
    %v398 = vpop.f32.mrb[0].mxu0
    %v399 = vpop.f32.mrb[0].mxu0
    %400 = vdwg.mxu0
    %v401 = vxor.u32 %v354, 2147483648
    %v402 = vxor.u32 %v356, 2147483648
    %v403 = vxor.u32 %v395, 2147483648
    %v404 = vxor.u32 %v397, 2147483648
    %v405 = vmul.f32 %v401, 1.442695
    %v406 = vpow.pop %v405
    %v407 = vmul.f32 %v402, 1.442695
    %v408 = vpow.pop %v407
    %v409 = vmul.f32 %v403, 1.442695
    %v410 = vpow.pop %v409
    %v411 = vmul.f32 %v404, 1.442695
    %v412 = vpow.pop %v411
    %v413 = vadd.f32 %v406, 1.0
    %v414 = vadd.f32 %v408, 1.0
    %v415 = vadd.f32 %v410, 1.0
    %v416 = vadd.f32 %v412, 1.0
    %v417 = vrcp.pop %v413
    %v418 = vmul.f32 1.0, %v417
    %v419 = vrcp.pop %v414
    %v420 = vmul.f32 1.0, %v419
    %v421 = vrcp.pop %v415
    %v422 = vmul.f32 1.0, %v421
    %v423 = vrcp.pop %v416
    %v424 = vmul.f32 1.0, %v423
    %v425 = vmul.f32 %v354, %v418
    %v426 = vmul.f32 %v356, %v420
    %v427 = vmul.f32 %v395, %v422
    %v428 = vmul.f32 %v397, %v424
    %v429 = vpack.c.bf16 %v425, %v425
    %v430 = vpack.c.bf16 %v426, %v426
    %v431 = vpack.c.bf16 %v427, %v427
    %v432 = vpack.c.bf16 %v428, %v428
    %v433 = vld [vmem:[#allocation7] sm:$0xff]
    %v434 = vld [vmem:[#allocation7 + $0x8] sm:$0xff]
    %v435 = vld [vmem:[#allocation7 + $0x10] sm:$0xff]
    %v436 = vld [vmem:[#allocation7 + $0x18] sm:$0xff]
    %v437 = vld [vmem:[#allocation7 + $0x20] sm:$0xff]
    %v438 = vld [vmem:[#allocation7 + $0x28] sm:$0xff]
    %v439 = vld [vmem:[#allocation7 + $0x30] sm:$0xff]
    %v440 = vld [vmem:[#allocation7 + $0x38] sm:$0xff]
    %v441 = vld [vmem:[#allocation7 + $0x40] sm:$0xff]
    %v442 = vld [vmem:[#allocation7 + $0x48] sm:$0xff]
    %v443 = vld [vmem:[#allocation7 + $0x50] sm:$0xff]
    %v444 = vld [vmem:[#allocation7 + $0x58] sm:$0xff]
    %v445 = vld [vmem:[#allocation7 + $0x60] sm:$0xff]
    %v446 = vld [vmem:[#allocation7 + $0x68] sm:$0xff]
    %v447 = vld [vmem:[#allocation7 + $0x70] sm:$0xff]
    %v448 = vld [vmem:[#allocation7 + $0x78] sm:$0xff]
    %v449 = vld [vmem:[#allocation7 + $0x80] sm:$0xff]
    %v450 = vld [vmem:[#allocation7 + $0x88] sm:$0xff]
    %v451 = vld [vmem:[#allocation7 + $0x90] sm:$0xff]
    %v452 = vld [vmem:[#allocation7 + $0x98] sm:$0xff]
    %v453 = vld [vmem:[#allocation7 + $0xa0] sm:$0xff]
    %v454 = vld [vmem:[#allocation7 + $0xa8] sm:$0xff]
    %v455 = vld [vmem:[#allocation7 + $0xb0] sm:$0xff]
    %v456 = vld [vmem:[#allocation7 + $0xb8] sm:$0xff]
    %v457 = vld [vmem:[#allocation7 + $0xc0] sm:$0xff]
    %v458 = vld [vmem:[#allocation7 + $0xc8] sm:$0xff]
    %v459 = vld [vmem:[#allocation7 + $0xd0] sm:$0xff]
    %v460 = vld [vmem:[#allocation7 + $0xd8] sm:$0xff]
    %v461 = vld [vmem:[#allocation7 + $0xe0] sm:$0xff]
    %v462 = vld [vmem:[#allocation7 + $0xe8] sm:$0xff]
    %v463 = vld [vmem:[#allocation7 + $0xf0] sm:$0xff]
    %v464 = vld [vmem:[#allocation7 + $0xf8] sm:$0xff]
    %v465 = vld [vmem:[#allocation7 + $0x100] sm:$0xff]
    %v466 = vld [vmem:[#allocation7 + $0x108] sm:$0xff]
    %v467 = vld [vmem:[#allocation7 + $0x110] sm:$0xff]
    %v468 = vld [vmem:[#allocation7 + $0x118] sm:$0xff]
    %v469 = vld [vmem:[#allocation7 + $0x120] sm:$0xff]
    %v470 = vld [vmem:[#allocation7 + $0x128] sm:$0xff]
    %v471 = vld [vmem:[#allocation7 + $0x130] sm:$0xff]
    %v472 = vld [vmem:[#allocation7 + $0x138] sm:$0xff]
    %v473 = vld [vmem:[#allocation7 + $0x140] sm:$0xff]
    %v474 = vld [vmem:[#allocation7 + $0x148] sm:$0xff]
    %v475 = vld [vmem:[#allocation7 + $0x150] sm:$0xff]
    %v476 = vld [vmem:[#allocation7 + $0x158] sm:$0xff]
    %v477 = vld [vmem:[#allocation7 + $0x160] sm:$0xff]
    %v478 = vld [vmem:[#allocation7 + $0x168] sm:$0xff]
    %v479 = vld [vmem:[#allocation7 + $0x170] sm:$0xff]
    %v480 = vld [vmem:[#allocation7 + $0x178] sm:$0xff]
    %v481 = vld [vmem:[#allocation7 + $0x180] sm:$0xff]
    %v482 = vld [vmem:[#allocation7 + $0x188] sm:$0xff]
    %v483 = vld [vmem:[#allocation7 + $0x190] sm:$0xff]
    %v484 = vld [vmem:[#allocation7 + $0x198] sm:$0xff]
    %v485 = vld [vmem:[#allocation7 + $0x1a0] sm:$0xff]
    %v486 = vld [vmem:[#allocation7 + $0x1a8] sm:$0xff]
    %v487 = vld [vmem:[#allocation7 + $0x1b0] sm:$0xff]
    %v488 = vld [vmem:[#allocation7 + $0x1b8] sm:$0xff]
    %v489 = vld [vmem:[#allocation7 + $0x1c0] sm:$0xff]
    %v490 = vld [vmem:[#allocation7 + $0x1c8] sm:$0xff]
    %v491 = vld [vmem:[#allocation7 + $0x1d0] sm:$0xff]
    %v492 = vld [vmem:[#allocation7 + $0x1d8] sm:$0xff]
    %v493 = vld [vmem:[#allocation7 + $0x1e0] sm:$0xff]
    %v494 = vld [vmem:[#allocation7 + $0x1e8] sm:$0xff]
    %v495 = vld [vmem:[#allocation7 + $0x1f0] sm:$0xff]
    %v496 = vld [vmem:[#allocation7 + $0x1f8] sm:$0xff]
    %v497 = vld [vmem:[#allocation7 + $0x200] sm:$0xff]
    %v498 = vld [vmem:[#allocation7 + $0x208] sm:$0xff]
    %v499 = vld [vmem:[#allocation7 + $0x210] sm:$0xff]
    %v500 = vld [vmem:[#allocation7 + $0x218] sm:$0xff]
    %v501 = vld [vmem:[#allocation7 + $0x220] sm:$0xff]
    %v502 = vld [vmem:[#allocation7 + $0x228] sm:$0xff]
    %v503 = vld [vmem:[#allocation7 + $0x230] sm:$0xff]
    %v504 = vld [vmem:[#allocation7 + $0x238] sm:$0xff]
    %v505 = vld [vmem:[#allocation7 + $0x240] sm:$0xff]
    %v506 = vld [vmem:[#allocation7 + $0x248] sm:$0xff]
    %v507 = vld [vmem:[#allocation7 + $0x250] sm:$0xff]
    %v508 = vld [vmem:[#allocation7 + $0x258] sm:$0xff]
    %v509 = vld [vmem:[#allocation7 + $0x260] sm:$0xff]
    %v510 = vld [vmem:[#allocation7 + $0x268] sm:$0xff]
    %v511 = vld [vmem:[#allocation7 + $0x270] sm:$0xff]
    %v512 = vld [vmem:[#allocation7 + $0x278] sm:$0xff]
    %v513 = vld [vmem:[#allocation7 + $0x280] sm:$0xff]
    %v514 = vld [vmem:[#allocation7 + $0x288] sm:$0xff]
    %v515 = vld [vmem:[#allocation7 + $0x290] sm:$0xff]
    %v516 = vld [vmem:[#allocation7 + $0x298] sm:$0xff]
    %v517 = vld [vmem:[#allocation7 + $0x2a0] sm:$0xff]
    %v518 = vld [vmem:[#allocation7 + $0x2a8] sm:$0xff]
    %v519 = vld [vmem:[#allocation7 + $0x2b0] sm:$0xff]
    %v520 = vld [vmem:[#allocation7 + $0x2b8] sm:$0xff]
    %v521 = vld [vmem:[#allocation7 + $0x2c0] sm:$0xff]
    %v522 = vld [vmem:[#allocation7 + $0x2c8] sm:$0xff]
    %v523 = vld [vmem:[#allocation7 + $0x2d0] sm:$0xff]
    %v524 = vld [vmem:[#allocation7 + $0x2d8] sm:$0xff]
    %v525 = vld [vmem:[#allocation7 + $0x2e0] sm:$0xff]
    %v526 = vld [vmem:[#allocation7 + $0x2e8] sm:$0xff]
    %v527 = vld [vmem:[#allocation7 + $0x2f0] sm:$0xff]
    %v528 = vld [vmem:[#allocation7 + $0x2f8] sm:$0xff]
    %v529 = vld [vmem:[#allocation7 + $0x300] sm:$0xff]
    %v530 = vld [vmem:[#allocation7 + $0x308] sm:$0xff]
    %v531 = vld [vmem:[#allocation7 + $0x310] sm:$0xff]
    %v532 = vld [vmem:[#allocation7 + $0x318] sm:$0xff]
    %v533 = vld [vmem:[#allocation7 + $0x320] sm:$0xff]
    %v534 = vld [vmem:[#allocation7 + $0x328] sm:$0xff]
    %v535 = vld [vmem:[#allocation7 + $0x330] sm:$0xff]
    %v536 = vld [vmem:[#allocation7 + $0x338] sm:$0xff]
    %v537 = vld [vmem:[#allocation7 + $0x340] sm:$0xff]
    %v538 = vld [vmem:[#allocation7 + $0x348] sm:$0xff]
    %v539 = vld [vmem:[#allocation7 + $0x350] sm:$0xff]
    %v540 = vld [vmem:[#allocation7 + $0x358] sm:$0xff]
    %v541 = vld [vmem:[#allocation7 + $0x360] sm:$0xff]
    %v542 = vld [vmem:[#allocation7 + $0x368] sm:$0xff]
    %v543 = vld [vmem:[#allocation7 + $0x370] sm:$0xff]
    %v544 = vld [vmem:[#allocation7 + $0x378] sm:$0xff]
    %v545 = vld [vmem:[#allocation7 + $0x380] sm:$0xff]
    %v546 = vld [vmem:[#allocation7 + $0x388] sm:$0xff]
    %v547 = vld [vmem:[#allocation7 + $0x390] sm:$0xff]
    %v548 = vld [vmem:[#allocation7 + $0x398] sm:$0xff]
    %v549 = vld [vmem:[#allocation7 + $0x3a0] sm:$0xff]
    %v550 = vld [vmem:[#allocation7 + $0x3a8] sm:$0xff]
    %v551 = vld [vmem:[#allocation7 + $0x3b0] sm:$0xff]
    %v552 = vld [vmem:[#allocation7 + $0x3b8] sm:$0xff]
    %v553 = vld [vmem:[#allocation7 + $0x3c0] sm:$0xff]
    %v554 = vld [vmem:[#allocation7 + $0x3c8] sm:$0xff]
    %v555 = vld [vmem:[#allocation7 + $0x3d0] sm:$0xff]
    %v556 = vld [vmem:[#allocation7 + $0x3d8] sm:$0xff]
    %v557 = vld [vmem:[#allocation7 + $0x3e0] sm:$0xff]
    %v558 = vld [vmem:[#allocation7 + $0x3e8] sm:$0xff]
    %v559 = vld [vmem:[#allocation7 + $0x3f0] sm:$0xff]
    %v560 = vld [vmem:[#allocation7 + $0x3f8] sm:$0xff]
    %v561 = vld [vmem:[%s6] sm:$0xf]
    %v563 = vlaneseq
    %v564 = vshrl.u32 %v563, 7
    %v565 = vsub.s32 0, %v564
    %v566 = vrot.slane %v561, %v565
    %v567 = vlaneseq
    %v568 = vshrl.u32 %v567, 7
    %v569 = vsub.s32 1, %v568
    %v570 = vrot.slane %v561, %v569
    %v571 = vlaneseq
    %v572 = vshrl.u32 %v571, 7
    %v573 = vsub.s32 2, %v572
    %v574 = vrot.slane %v561, %v573
    %v575 = vlaneseq
    %v576 = vshrl.u32 %v575, 7
    %v577 = vsub.s32 3, %v576
    %v578 = vrot.slane %v561, %v577
    %v711 = vunpack.c.l.b16 %v433
    %v712 = vunpack.c.h.b16 %v433
    %v713 = vunpack.c.l.b16 %v434
    %v714 = vunpack.c.h.b16 %v434
    %v715 = vunpack.c.l.b16 %v435
    %v716 = vunpack.c.h.b16 %v435
    %v717 = vunpack.c.l.b16 %v436
    %v718 = vunpack.c.h.b16 %v436
    %v719 = vunpack.c.l.b16 %v437
    %v720 = vunpack.c.h.b16 %v437
    %v721 = vunpack.c.l.b16 %v438
    %v722 = vunpack.c.h.b16 %v438
    %v723 = vunpack.c.l.b16 %v439
    %v724 = vunpack.c.h.b16 %v439
    %v725 = vunpack.c.l.b16 %v440
    %v726 = vunpack.c.h.b16 %v440
    %v727 = vunpack.c.l.b16 %v441
    %v728 = vunpack.c.h.b16 %v441
    %v729 = vunpack.c.l.b16 %v442
    %v730 = vunpack.c.h.b16 %v442
    %v731 = vunpack.c.l.b16 %v443
    %v732 = vunpack.c.h.b16 %v443
    %v733 = vunpack.c.l.b16 %v444
    %v734 = vunpack.c.h.b16 %v444
    %v735 = vunpack.c.l.b16 %v445
    %v736 = vunpack.c.h.b16 %v445
    %v737 = vunpack.c.l.b16 %v446
    %v738 = vunpack.c.h.b16 %v446
    %v739 = vunpack.c.l.b16 %v447
    %v740 = vunpack.c.h.b16 %v447
    %v741 = vunpack.c.l.b16 %v448
    %v742 = vunpack.c.h.b16 %v448
    %v743 = vunpack.c.l.b16 %v449
    %v744 = vunpack.c.h.b16 %v449
    %v745 = vunpack.c.l.b16 %v450
    %v746 = vunpack.c.h.b16 %v450
    %v747 = vunpack.c.l.b16 %v451
    %v748 = vunpack.c.h.b16 %v451
    %v749 = vunpack.c.l.b16 %v452
    %v750 = vunpack.c.h.b16 %v452
    %v751 = vunpack.c.l.b16 %v453
    %v752 = vunpack.c.h.b16 %v453
    %v753 = vunpack.c.l.b16 %v454
    %v754 = vunpack.c.h.b16 %v454
    %v755 = vunpack.c.l.b16 %v455
    %v756 = vunpack.c.h.b16 %v455
    %v757 = vunpack.c.l.b16 %v456
    %v758 = vunpack.c.h.b16 %v456
    %v759 = vunpack.c.l.b16 %v457
    %v760 = vunpack.c.h.b16 %v457
    %v761 = vunpack.c.l.b16 %v458
    %v762 = vunpack.c.h.b16 %v458
    %v763 = vunpack.c.l.b16 %v459
    %v764 = vunpack.c.h.b16 %v459
    %v765 = vunpack.c.l.b16 %v460
    %v766 = vunpack.c.h.b16 %v460
    %v767 = vunpack.c.l.b16 %v461
    %v768 = vunpack.c.h.b16 %v461
    %v769 = vunpack.c.l.b16 %v462
    %v770 = vunpack.c.h.b16 %v462
    %v771 = vunpack.c.l.b16 %v463
    %v772 = vunpack.c.h.b16 %v463
    %v773 = vunpack.c.l.b16 %v464
    %v774 = vunpack.c.h.b16 %v464
    %v775 = vunpack.c.l.b16 %v465
    %v776 = vunpack.c.h.b16 %v465
    %v777 = vunpack.c.l.b16 %v466
    %v778 = vunpack.c.h.b16 %v466
    %v779 = vunpack.c.l.b16 %v467
    %v780 = vunpack.c.h.b16 %v467
    %v781 = vunpack.c.l.b16 %v468
    %v782 = vunpack.c.h.b16 %v468
    %v783 = vunpack.c.l.b16 %v469
    %v784 = vunpack.c.h.b16 %v469
    %v785 = vunpack.c.l.b16 %v470
    %v786 = vunpack.c.h.b16 %v470
    %v787 = vunpack.c.l.b16 %v471
    %v788 = vunpack.c.h.b16 %v471
    %v789 = vunpack.c.l.b16 %v472
    %v790 = vunpack.c.h.b16 %v472
    %v791 = vunpack.c.l.b16 %v473
    %v792 = vunpack.c.h.b16 %v473
    %v793 = vunpack.c.l.b16 %v474
    %v794 = vunpack.c.h.b16 %v474
    %v795 = vunpack.c.l.b16 %v475
    %v796 = vunpack.c.h.b16 %v475
    %v797 = vunpack.c.l.b16 %v476
    %v798 = vunpack.c.h.b16 %v476
    %v799 = vunpack.c.l.b16 %v477
    %v800 = vunpack.c.h.b16 %v477
    %v801 = vunpack.c.l.b16 %v478
    %v802 = vunpack.c.h.b16 %v478
    %v803 = vunpack.c.l.b16 %v479
    %v804 = vunpack.c.h.b16 %v479
    %v805 = vunpack.c.l.b16 %v480
    %v806 = vunpack.c.h.b16 %v480
    %v807 = vunpack.c.l.b16 %v481
    %v808 = vunpack.c.h.b16 %v481
    %v809 = vunpack.c.l.b16 %v482
    %v810 = vunpack.c.h.b16 %v482
    %v811 = vunpack.c.l.b16 %v483
    %v812 = vunpack.c.h.b16 %v483
    %v813 = vunpack.c.l.b16 %v484
    %v814 = vunpack.c.h.b16 %v484
    %v815 = vunpack.c.l.b16 %v485
    %v816 = vunpack.c.h.b16 %v485
    %v817 = vunpack.c.l.b16 %v486
    %v818 = vunpack.c.h.b16 %v486
    %v819 = vunpack.c.l.b16 %v487
    %v820 = vunpack.c.h.b16 %v487
    %v821 = vunpack.c.l.b16 %v488
    %v822 = vunpack.c.h.b16 %v488
    %v823 = vunpack.c.l.b16 %v489
    %v824 = vunpack.c.h.b16 %v489
    %v825 = vunpack.c.l.b16 %v490
    %v826 = vunpack.c.h.b16 %v490
    %v827 = vunpack.c.l.b16 %v491
    %v828 = vunpack.c.h.b16 %v491
    %v829 = vunpack.c.l.b16 %v492
    %v830 = vunpack.c.h.b16 %v492
    %v831 = vunpack.c.l.b16 %v493
    %v832 = vunpack.c.h.b16 %v493
    %v833 = vunpack.c.l.b16 %v494
    %v834 = vunpack.c.h.b16 %v494
    %v835 = vunpack.c.l.b16 %v495
    %v836 = vunpack.c.h.b16 %v495
    %v837 = vunpack.c.l.b16 %v496
    %v838 = vunpack.c.h.b16 %v496
    %v839 = vunpack.c.l.b16 %v497
    %v840 = vunpack.c.h.b16 %v497
    %v841 = vunpack.c.l.b16 %v498
    %v842 = vunpack.c.h.b16 %v498
    %v843 = vunpack.c.l.b16 %v499
    %v844 = vunpack.c.h.b16 %v499
    %v845 = vunpack.c.l.b16 %v500
    %v846 = vunpack.c.h.b16 %v500
    %v847 = vunpack.c.l.b16 %v501
    %v848 = vunpack.c.h.b16 %v501
    %v849 = vunpack.c.l.b16 %v502
    %v850 = vunpack.c.h.b16 %v502
    %v851 = vunpack.c.l.b16 %v503
    %v852 = vunpack.c.h.b16 %v503
    %v853 = vunpack.c.l.b16 %v504
    %v854 = vunpack.c.h.b16 %v504
    %v855 = vunpack.c.l.b16 %v505
    %v856 = vunpack.c.h.b16 %v505
    %v857 = vunpack.c.l.b16 %v506
    %v858 = vunpack.c.h.b16 %v506
    %v859 = vunpack.c.l.b16 %v507
    %v860 = vunpack.c.h.b16 %v507
    %v861 = vunpack.c.l.b16 %v508
    %v862 = vunpack.c.h.b16 %v508
    %v863 = vunpack.c.l.b16 %v509
    %v864 = vunpack.c.h.b16 %v509
    %v865 = vunpack.c.l.b16 %v510
    %v866 = vunpack.c.h.b16 %v510
    %v867 = vunpack.c.l.b16 %v511
    %v868 = vunpack.c.h.b16 %v511
    %v869 = vunpack.c.l.b16 %v512
    %v870 = vunpack.c.h.b16 %v512
    %v871 = vunpack.c.l.b16 %v513
    %v872 = vunpack.c.h.b16 %v513
    %v873 = vunpack.c.l.b16 %v514
    %v874 = vunpack.c.h.b16 %v514
    %v875 = vunpack.c.l.b16 %v515
    %v876 = vunpack.c.h.b16 %v515
    %v877 = vunpack.c.l.b16 %v516
    %v878 = vunpack.c.h.b16 %v516
    %v879 = vunpack.c.l.b16 %v517
    %v880 = vunpack.c.h.b16 %v517
    %v881 = vunpack.c.l.b16 %v518
    %v882 = vunpack.c.h.b16 %v518
    %v883 = vunpack.c.l.b16 %v519
    %v884 = vunpack.c.h.b16 %v519
    %v885 = vunpack.c.l.b16 %v520
    %v886 = vunpack.c.h.b16 %v520
    %v887 = vunpack.c.l.b16 %v521
    %v888 = vunpack.c.h.b16 %v521
    %v889 = vunpack.c.l.b16 %v522
    %v890 = vunpack.c.h.b16 %v522
    %v891 = vunpack.c.l.b16 %v523
    %v892 = vunpack.c.h.b16 %v523
    %v893 = vunpack.c.l.b16 %v524
    %v894 = vunpack.c.h.b16 %v524
    %v895 = vunpack.c.l.b16 %v525
    %v896 = vunpack.c.h.b16 %v525
    %v897 = vunpack.c.l.b16 %v526
    %v898 = vunpack.c.h.b16 %v526
    %v899 = vunpack.c.l.b16 %v527
    %v900 = vunpack.c.h.b16 %v527
    %v901 = vunpack.c.l.b16 %v528
    %v902 = vunpack.c.h.b16 %v528
    %v903 = vunpack.c.l.b16 %v529
    %v904 = vunpack.c.h.b16 %v529
    %v905 = vunpack.c.l.b16 %v530
    %v906 = vunpack.c.h.b16 %v530
    %v907 = vunpack.c.l.b16 %v531
    %v908 = vunpack.c.h.b16 %v531
    %v909 = vunpack.c.l.b16 %v532
    %v910 = vunpack.c.h.b16 %v532
    %v911 = vunpack.c.l.b16 %v533
    %v912 = vunpack.c.h.b16 %v533
    %v913 = vunpack.c.l.b16 %v534
    %v914 = vunpack.c.h.b16 %v534
    %v915 = vunpack.c.l.b16 %v535
    %v916 = vunpack.c.h.b16 %v535
    %v917 = vunpack.c.l.b16 %v536
    %v918 = vunpack.c.h.b16 %v536
    %v919 = vunpack.c.l.b16 %v537
    %v920 = vunpack.c.h.b16 %v537
    %v921 = vunpack.c.l.b16 %v538
    %v922 = vunpack.c.h.b16 %v538
    %v923 = vunpack.c.l.b16 %v539
    %v924 = vunpack.c.h.b16 %v539
    %v925 = vunpack.c.l.b16 %v540
    %v926 = vunpack.c.h.b16 %v540
    %v927 = vunpack.c.l.b16 %v541
    %v928 = vunpack.c.h.b16 %v541
    %v929 = vunpack.c.l.b16 %v542
    %v930 = vunpack.c.h.b16 %v542
    %v931 = vunpack.c.l.b16 %v543
    %v932 = vunpack.c.h.b16 %v543
    %v933 = vunpack.c.l.b16 %v544
    %v934 = vunpack.c.h.b16 %v544
    %v935 = vunpack.c.l.b16 %v545
    %v936 = vunpack.c.h.b16 %v545
    %v937 = vunpack.c.l.b16 %v546
    %v938 = vunpack.c.h.b16 %v546
    %v939 = vunpack.c.l.b16 %v547
    %v940 = vunpack.c.h.b16 %v547
    %v941 = vunpack.c.l.b16 %v548
    %v942 = vunpack.c.h.b16 %v548
    %v943 = vunpack.c.l.b16 %v549
    %v944 = vunpack.c.h.b16 %v549
    %v945 = vunpack.c.l.b16 %v550
    %v946 = vunpack.c.h.b16 %v550
    %v947 = vunpack.c.l.b16 %v551
    %v948 = vunpack.c.h.b16 %v551
    %v949 = vunpack.c.l.b16 %v552
    %v950 = vunpack.c.h.b16 %v552
    %v951 = vunpack.c.l.b16 %v553
    %v952 = vunpack.c.h.b16 %v553
    %v953 = vunpack.c.l.b16 %v554
    %v954 = vunpack.c.h.b16 %v554
    %v955 = vunpack.c.l.b16 %v555
    %v956 = vunpack.c.h.b16 %v555
    %v957 = vunpack.c.l.b16 %v556
    %v958 = vunpack.c.h.b16 %v556
    %v959 = vunpack.c.l.b16 %v557
    %v960 = vunpack.c.h.b16 %v557
    %v961 = vunpack.c.l.b16 %v558
    %v962 = vunpack.c.h.b16 %v558
    %v963 = vunpack.c.l.b16 %v559
    %v964 = vunpack.c.h.b16 %v559
    %v965 = vunpack.c.l.b16 %v560
    %v966 = vunpack.c.h.b16 %v560
    %v967 = vpack.c.b16 %v715, %v711
    %v968 = vpack.c.b16 %v716, %v712
    %v969 = vpack.c.b16 %v717, %v713
    %v970 = vpack.c.b16 %v718, %v714
    %v971 = vpack.c.b16 %v723, %v719
    %v972 = vpack.c.b16 %v724, %v720
    %v973 = vpack.c.b16 %v725, %v721
    %v974 = vpack.c.b16 %v726, %v722
    %v975 = vpack.c.b16 %v731, %v727
    %v976 = vpack.c.b16 %v732, %v728
    %v977 = vpack.c.b16 %v733, %v729
    %v978 = vpack.c.b16 %v734, %v730
    %v979 = vpack.c.b16 %v739, %v735
    %v980 = vpack.c.b16 %v740, %v736
    %v981 = vpack.c.b16 %v741, %v737
    %v982 = vpack.c.b16 %v742, %v738
    %v983 = vpack.c.b16 %v747, %v743
    %v984 = vpack.c.b16 %v748, %v744
    %v985 = vpack.c.b16 %v749, %v745
    %v986 = vpack.c.b16 %v750, %v746
    %v987 = vpack.c.b16 %v755, %v751
    %v988 = vpack.c.b16 %v756, %v752
    %v989 = vpack.c.b16 %v757, %v753
    %v990 = vpack.c.b16 %v758, %v754
    %v991 = vpack.c.b16 %v763, %v759
    %v992 = vpack.c.b16 %v764, %v760
    %v993 = vpack.c.b16 %v765, %v761
    %v994 = vpack.c.b16 %v766, %v762
    %v995 = vpack.c.b16 %v771, %v767
    %v996 = vpack.c.b16 %v772, %v768
    %v997 = vpack.c.b16 %v773, %v769
    %v998 = vpack.c.b16 %v774, %v770
    %v999 = vpack.c.b16 %v779, %v775
    %v1000 = vpack.c.b16 %v780, %v776
    %v1001 = vpack.c.b16 %v781, %v777
    %v1002 = vpack.c.b16 %v782, %v778
    %v1003 = vpack.c.b16 %v787, %v783
    %v1004 = vpack.c.b16 %v788, %v784
    %v1005 = vpack.c.b16 %v789, %v785
    %v1006 = vpack.c.b16 %v790, %v786
    %v1007 = vpack.c.b16 %v795, %v791
    %v1008 = vpack.c.b16 %v796, %v792
    %v1009 = vpack.c.b16 %v797, %v793
    %v1010 = vpack.c.b16 %v798, %v794
    %v1011 = vpack.c.b16 %v803, %v799
    %v1012 = vpack.c.b16 %v804, %v800
    %v1013 = vpack.c.b16 %v805, %v801
    %v1014 = vpack.c.b16 %v806, %v802
    %v1015 = vpack.c.b16 %v811, %v807
    %v1016 = vpack.c.b16 %v812, %v808
    %v1017 = vpack.c.b16 %v813, %v809
    %v1018 = vpack.c.b16 %v814, %v810
    %v1019 = vpack.c.b16 %v819, %v815
    %v1020 = vpack.c.b16 %v820, %v816
    %v1021 = vpack.c.b16 %v821, %v817
    %v1022 = vpack.c.b16 %v822, %v818
    %v1023 = vpack.c.b16 %v827, %v823
    %v1024 = vpack.c.b16 %v828, %v824
    %v1025 = vpack.c.b16 %v829, %v825
    %v1026 = vpack.c.b16 %v830, %v826
    %v1027 = vpack.c.b16 %v835, %v831
    %v1028 = vpack.c.b16 %v836, %v832
    %v1029 = vpack.c.b16 %v837, %v833
    %v1030 = vpack.c.b16 %v838, %v834
    %v1031 = vpack.c.b16 %v843, %v839
    %v1032 = vpack.c.b16 %v844, %v840
    %v1033 = vpack.c.b16 %v845, %v841
    %v1034 = vpack.c.b16 %v846, %v842
    %v1035 = vpack.c.b16 %v851, %v847
    %v1036 = vpack.c.b16 %v852, %v848
    %v1037 = vpack.c.b16 %v853, %v849
    %v1038 = vpack.c.b16 %v854, %v850
    %v1039 = vpack.c.b16 %v859, %v855
    %v1040 = vpack.c.b16 %v860, %v856
    %v1041 = vpack.c.b16 %v861, %v857
    %v1042 = vpack.c.b16 %v862, %v858
    %v1043 = vpack.c.b16 %v867, %v863
    %v1044 = vpack.c.b16 %v868, %v864
    %v1045 = vpack.c.b16 %v869, %v865
    %v1046 = vpack.c.b16 %v870, %v866
    %v1047 = vpack.c.b16 %v875, %v871
    %v1048 = vpack.c.b16 %v876, %v872
    %v1049 = vpack.c.b16 %v877, %v873
    %v1050 = vpack.c.b16 %v878, %v874
    %v1051 = vpack.c.b16 %v883, %v879
    %v1052 = vpack.c.b16 %v884, %v880
    %v1053 = vpack.c.b16 %v885, %v881
    %v1054 = vpack.c.b16 %v886, %v882
    %v1055 = vpack.c.b16 %v891, %v887
    %v1056 = vpack.c.b16 %v892, %v888
    %v1057 = vpack.c.b16 %v893, %v889
    %v1058 = vpack.c.b16 %v894, %v890
    %v1059 = vpack.c.b16 %v899, %v895
    %v1060 = vpack.c.b16 %v900, %v896
    %v1061 = vpack.c.b16 %v901, %v897
    %v1062 = vpack.c.b16 %v902, %v898
    %v1063 = vpack.c.b16 %v907, %v903
    %v1064 = vpack.c.b16 %v908, %v904
    %v1065 = vpack.c.b16 %v909, %v905
    %v1066 = vpack.c.b16 %v910, %v906
    %v1067 = vpack.c.b16 %v915, %v911
    %v1068 = vpack.c.b16 %v916, %v912
    %v1069 = vpack.c.b16 %v917, %v913
    %v1070 = vpack.c.b16 %v918, %v914
    %v1071 = vpack.c.b16 %v923, %v919
    %v1072 = vpack.c.b16 %v924, %v920
    %v1073 = vpack.c.b16 %v925, %v921
    %v1074 = vpack.c.b16 %v926, %v922
    %v1075 = vpack.c.b16 %v931, %v927
    %v1076 = vpack.c.b16 %v932, %v928
    %v1077 = vpack.c.b16 %v933, %v929
    %v1078 = vpack.c.b16 %v934, %v930
    %v1079 = vpack.c.b16 %v939, %v935
    %v1080 = vpack.c.b16 %v940, %v936
    %v1081 = vpack.c.b16 %v941, %v937
    %v1082 = vpack.c.b16 %v942, %v938
    %v1083 = vpack.c.b16 %v947, %v943
    %v1084 = vpack.c.b16 %v948, %v944
    %v1085 = vpack.c.b16 %v949, %v945
    %v1086 = vpack.c.b16 %v950, %v946
    %v1087 = vpack.c.b16 %v955, %v951
    %v1088 = vpack.c.b16 %v956, %v952
    %v1089 = vpack.c.b16 %v957, %v953
    %v1090 = vpack.c.b16 %v958, %v954
    %v1091 = vpack.c.b16 %v963, %v959
    %v1092 = vpack.c.b16 %v964, %v960
    %v1093 = vpack.c.b16 %v965, %v961
    %v1094 = vpack.c.b16 %v966, %v962
    %1223 = vmatprep.subr.bf16.mxu0 %v968
    %1224 = vmatpush1.bf16.msra.mxu0 %v967
    %1225 = vmatprep.subr.bf16.mxu0 %v972
    %1226 = vmatpush1.bf16.msra.mxu0 %v971
    %1227 = vmatprep.subr.bf16.mxu0 %v976
    %1228 = vmatpush1.bf16.msra.mxu0 %v975
    %1229 = vmatprep.subr.bf16.mxu0 %v980
    %1230 = vmatpush1.bf16.msra.mxu0 %v979
    %1231 = vmatprep.subr.bf16.mxu0 %v984
    %1232 = vmatpush1.bf16.msra.mxu0 %v983
    %1233 = vmatprep.subr.bf16.mxu0 %v988
    %1234 = vmatpush1.bf16.msra.mxu0 %v987
    %1235 = vmatprep.subr.bf16.mxu0 %v992
    %1236 = vmatpush1.bf16.msra.mxu0 %v991
    %1237 = vmatprep.subr.bf16.mxu0 %v996
    %1238 = vmatpush1.bf16.msra.mxu0 %v995
    %1239 = vmatprep.subr.bf16.mxu0 %v1000
    %1240 = vmatpush1.bf16.msra.mxu0 %v999
    %1241 = vmatprep.subr.bf16.mxu0 %v1004
    %1242 = vmatpush1.bf16.msra.mxu0 %v1003
    %1243 = vmatprep.subr.bf16.mxu0 %v1008
    %1244 = vmatpush1.bf16.msra.mxu0 %v1007
    %1245 = vmatprep.subr.bf16.mxu0 %v1012
    %1246 = vmatpush1.bf16.msra.mxu0 %v1011
    %1247 = vmatprep.subr.bf16.mxu0 %v1016
    %1248 = vmatpush1.bf16.msra.mxu0 %v1015
    %1249 = vmatprep.subr.bf16.mxu0 %v1020
    %1250 = vmatpush1.bf16.msra.mxu0 %v1019
    %1251 = vmatprep.subr.bf16.mxu0 %v1024
    %1252 = vmatpush1.bf16.msra.mxu0 %v1023
    %1253 = vmatprep.subr.bf16.mxu0 %v1028
    %1254 = vmatpush1.bf16.msra.mxu0 %v1027
    %1255 = vmatprep.mubr.bf16.mxu0 %v430
    %1256 = vmatmul.mubr.bf16.gmra.mrb[0].mxu0 %v429
    %v1257 = vpop.f32.mrb[0].mxu0
    %v1258 = vadd.f32 %v566, %v1257
    %v1259 = vpop.f32.mrb[0].mxu0
    %v1260 = vadd.f32 %v570, %v1259
    %v1261 = vpop.f32.mrb[0].mxu0
    %v1262 = vpop.f32.mrb[0].mxu0
    %1263 = vdwg.mxu0
    %1264 = vmatprep.subr.bf16.mxu0 %v1032
    %1265 = vmatpush1.bf16.msra.mxu0 %v1031
    %1266 = vmatprep.subr.bf16.mxu0 %v1036
    %1267 = vmatpush1.bf16.msra.mxu0 %v1035
    %1268 = vmatprep.subr.bf16.mxu0 %v1040
    %1269 = vmatpush1.bf16.msra.mxu0 %v1039
    %1270 = vmatprep.subr.bf16.mxu0 %v1044
    %1271 = vmatpush1.bf16.msra.mxu0 %v1043
    %1272 = vmatprep.subr.bf16.mxu0 %v1048
    %1273 = vmatpush1.bf16.msra.mxu0 %v1047
    %1274 = vmatprep.subr.bf16.mxu0 %v1052
    %1275 = vmatpush1.bf16.msra.mxu0 %v1051
    %1276 = vmatprep.subr.bf16.mxu0 %v1056
    %1277 = vmatpush1.bf16.msra.mxu0 %v1055
    %1278 = vmatprep.subr.bf16.mxu0 %v1060
    %1279 = vmatpush1.bf16.msra.mxu0 %v1059
    %1280 = vmatprep.subr.bf16.mxu0 %v1064
    %1281 = vmatpush1.bf16.msra.mxu0 %v1063
    %1282 = vmatprep.subr.bf16.mxu0 %v1068
    %1283 = vmatpush1.bf16.msra.mxu0 %v1067
    %1284 = vmatprep.subr.bf16.mxu0 %v1072
    %1285 = vmatpush1.bf16.msra.mxu0 %v1071
    %1286 = vmatprep.subr.bf16.mxu0 %v1076
    %1287 = vmatpush1.bf16.msra.mxu0 %v1075
    %1288 = vmatprep.subr.bf16.mxu0 %v1080
    %1289 = vmatpush1.bf16.msra.mxu0 %v1079
    %1290 = vmatprep.subr.bf16.mxu0 %v1084
    %1291 = vmatpush1.bf16.msra.mxu0 %v1083
    %1292 = vmatprep.subr.bf16.mxu0 %v1088
    %1293 = vmatpush1.bf16.msra.mxu0 %v1087
    %1294 = vmatprep.subr.bf16.mxu0 %v1092
    %1295 = vmatpush1.bf16.msra.mxu0 %v1091
    %1296 = vmatprep.mubr.bf16.mxu0 %v432
    %1297 = vmatmul.mubr.bf16.gmra.mrb[0].mxu0 %v431
    %v1298 = vpop.f32.mrb[0].mxu0
    %v1299 = vadd.f32 %v1258, %v1298
    %v1300 = vpop.f32.mrb[0].mxu0
    %v1301 = vadd.f32 %v1260, %v1300
    %v1302 = vpop.f32.mrb[0].mxu0
    %v1303 = vpop.f32.mrb[0].mxu0
    %1304 = vdwg.mxu0
    %1305 = vmatprep.subr.bf16.mxu0 %v970
    %1306 = vmatpush1.bf16.msra.mxu0 %v969
    %1307 = vmatprep.subr.bf16.mxu0 %v974
    %1308 = vmatpush1.bf16.msra.mxu0 %v973
    %1309 = vmatprep.subr.bf16.mxu0 %v978
    %1310 = vmatpush1.bf16.msra.mxu0 %v977
    %1311 = vmatprep.subr.bf16.mxu0 %v982
    %1312 = vmatpush1.bf16.msra.mxu0 %v981
    %1313 = vmatprep.subr.bf16.mxu0 %v986
    %1314 = vmatpush1.bf16.msra.mxu0 %v985
    %1315 = vmatprep.subr.bf16.mxu0 %v990
    %1316 = vmatpush1.bf16.msra.mxu0 %v989
    %1317 = vmatprep.subr.bf16.mxu0 %v994
    %1318 = vmatpush1.bf16.msra.mxu0 %v993
    %1319 = vmatprep.subr.bf16.mxu0 %v998
    %1320 = vmatpush1.bf16.msra.mxu0 %v997
    %1321 = vmatprep.subr.bf16.mxu0 %v1002
    %1322 = vmatpush1.bf16.msra.mxu0 %v1001
    %1323 = vmatprep.subr.bf16.mxu0 %v1006
    %1324 = vmatpush1.bf16.msra.mxu0 %v1005
    %1325 = vmatprep.subr.bf16.mxu0 %v1010
    %1326 = vmatpush1.bf16.msra.mxu0 %v1009
    %1327 = vmatprep.subr.bf16.mxu0 %v1014
    %1328 = vmatpush1.bf16.msra.mxu0 %v1013
    %1329 = vmatprep.subr.bf16.mxu0 %v1018
    %1330 = vmatpush1.bf16.msra.mxu0 %v1017
    %1331 = vmatprep.subr.bf16.mxu0 %v1022
    %1332 = vmatpush1.bf16.msra.mxu0 %v1021
    %1333 = vmatprep.subr.bf16.mxu0 %v1026
    %1334 = vmatpush1.bf16.msra.mxu0 %v1025
    %1335 = vmatprep.subr.bf16.mxu0 %v1030
    %1336 = vmatpush1.bf16.msra.mxu0 %v1029
    %1337 = vmatprep.mubr.bf16.mxu0 %v430
    %1338 = vmatmul.mubr.bf16.gmra.mrb[0].mxu0 %v429
    %v1339 = vpop.f32.mrb[0].mxu0
    %v1340 = vadd.f32 %v574, %v1339
    %v1341 = vpop.f32.mrb[0].mxu0
    %v1342 = vadd.f32 %v578, %v1341
    %v1343 = vpop.f32.mrb[0].mxu0
    %v1344 = vpop.f32.mrb[0].mxu0
    %1345 = vdwg.mxu0
    %1346 = vmatprep.subr.bf16.mxu0 %v1034
    %1347 = vmatpush1.bf16.msra.mxu0 %v1033
    %1348 = vmatprep.subr.bf16.mxu0 %v1038
    %1349 = vmatpush1.bf16.msra.mxu0 %v1037
    %1350 = vmatprep.subr.bf16.mxu0 %v1042
    %1351 = vmatpush1.bf16.msra.mxu0 %v1041
    %1352 = vmatprep.subr.bf16.mxu0 %v1046
    %1353 = vmatpush1.bf16.msra.mxu0 %v1045
    %1354 = vmatprep.subr.bf16.mxu0 %v1050
    %1355 = vmatpush1.bf16.msra.mxu0 %v1049
    %1356 = vmatprep.subr.bf16.mxu0 %v1054
    %1357 = vmatpush1.bf16.msra.mxu0 %v1053
    %1358 = vmatprep.subr.bf16.mxu0 %v1058
    %1359 = vmatpush1.bf16.msra.mxu0 %v1057
    %1360 = vmatprep.subr.bf16.mxu0 %v1062
    %1361 = vmatpush1.bf16.msra.mxu0 %v1061
    %1362 = vmatprep.subr.bf16.mxu0 %v1066
    %1363 = vmatpush1.bf16.msra.mxu0 %v1065
    %1364 = vmatprep.subr.bf16.mxu0 %v1070
    %1365 = vmatpush1.bf16.msra.mxu0 %v1069
    %1366 = vmatprep.subr.bf16.mxu0 %v1074
    %1367 = vmatpush1.bf16.msra.mxu0 %v1073
    %1368 = vmatprep.subr.bf16.mxu0 %v1078
    %1369 = vmatpush1.bf16.msra.mxu0 %v1077
    %1370 = vmatprep.subr.bf16.mxu0 %v1082
    %1371 = vmatpush1.bf16.msra.mxu0 %v1081
    %1372 = vmatprep.subr.bf16.mxu0 %v1086
    %1373 = vmatpush1.bf16.msra.mxu0 %v1085
    %1374 = vmatprep.subr.bf16.mxu0 %v1090
    %1375 = vmatpush1.bf16.msra.mxu0 %v1089
    %1376 = vmatprep.subr.bf16.mxu0 %v1094
    %1377 = vmatpush1.bf16.msra.mxu0 %v1093
    %1378 = vmatprep.mubr.bf16.mxu0 %v432
    %1379 = vmatmul.mubr.bf16.gmra.mrb[0].mxu0 %v431
    %v1380 = vpop.f32.mrb[0].mxu0
    %v1381 = vadd.f32 %v1340, %v1380
    %v1382 = vpop.f32.mrb[0].mxu0
    %v1383 = vadd.f32 %v1342, %v1382
    %v1384 = vpop.f32.mrb[0].mxu0
    %v1385 = vpop.f32.mrb[0].mxu0
    %1386 = vdwg.mxu0
    %v1387 = vxor.u32 %v1299, 2147483648
    %v1388 = vxor.u32 %v1301, 2147483648
    %v1389 = vxor.u32 %v1381, 2147483648
    %v1390 = vxor.u32 %v1383, 2147483648
    %v1391 = vmul.f32 %v1387, 1.442695
    %v1392 = vpow.pop %v1391
    %v1393 = vmul.f32 %v1388, 1.442695
    %v1394 = vpow.pop %v1393
    %v1395 = vmul.f32 %v1389, 1.442695
    %v1396 = vpow.pop %v1395
    %v1397 = vmul.f32 %v1390, 1.442695
    %v1398 = vpow.pop %v1397
    %v1399 = vadd.f32 %v1392, 1.0
    %v1400 = vadd.f32 %v1394, 1.0
    %v1401 = vadd.f32 %v1396, 1.0
    %v1402 = vadd.f32 %v1398, 1.0
    %v1403 = vrcp.pop %v1399
    %v1404 = vmul.f32 1.0, %v1403
    %v1405 = vrcp.pop %v1400
    %v1406 = vmul.f32 1.0, %v1405
    %v1407 = vrcp.pop %v1401
    %v1408 = vmul.f32 1.0, %v1407
    %v1409 = vrcp.pop %v1402
    %v1410 = vmul.f32 1.0, %v1409
    %v1411 = vmul.f32 %v1299, %v1404
    %v1412 = vmul.f32 %v1301, %v1406
    %v1413 = vmul.f32 %v1381, %v1408
    %v1414 = vmul.f32 %v1383, %v1410
    %v1415 = vpack.c.bf16 %v1411, %v1411
    %v1416 = vpack.c.bf16 %v1412, %v1412
    %v1417 = vpack.c.bf16 %v1413, %v1413
    %v1418 = vpack.c.bf16 %v1414, %v1414
    %v1419 = vld [vmem:[#allocation8] sm:$0xf]
    %v1420 = vld [vmem:[#allocation8 + $0x4] sm:$0xf]
    %v1421 = vld [vmem:[#allocation8 + $0x8] sm:$0xf]
    %v1422 = vld [vmem:[#allocation8 + $0xc] sm:$0xf]
    %v1423 = vld [vmem:[#allocation8 + $0x10] sm:$0xf]
    %v1424 = vld [vmem:[#allocation8 + $0x14] sm:$0xf]
    %v1425 = vld [vmem:[#allocation8 + $0x18] sm:$0xf]
    %v1426 = vld [vmem:[#allocation8 + $0x1c] sm:$0xf]
    %v1427 = vld [vmem:[#allocation8 + $0x20] sm:$0xf]
    %v1428 = vld [vmem:[#allocation8 + $0x24] sm:$0xf]
    %v1429 = vld [vmem:[#allocation8 + $0x28] sm:$0xf]
    %v1430 = vld [vmem:[#allocation8 + $0x2c] sm:$0xf]
    %v1431 = vld [vmem:[#allocation8 + $0x30] sm:$0xf]
    %v1432 = vld [vmem:[#allocation8 + $0x34] sm:$0xf]
    %v1433 = vld [vmem:[#allocation8 + $0x38] sm:$0xf]
    %v1434 = vld [vmem:[#allocation8 + $0x3c] sm:$0xf]
    %v1435 = vld [vmem:[#allocation8 + $0x40] sm:$0xf]
    %v1436 = vld [vmem:[#allocation8 + $0x44] sm:$0xf]
    %v1437 = vld [vmem:[#allocation8 + $0x48] sm:$0xf]
    %v1438 = vld [vmem:[#allocation8 + $0x4c] sm:$0xf]
    %v1439 = vld [vmem:[#allocation8 + $0x50] sm:$0xf]
    %v1440 = vld [vmem:[#allocation8 + $0x54] sm:$0xf]
    %v1441 = vld [vmem:[#allocation8 + $0x58] sm:$0xf]
    %v1442 = vld [vmem:[#allocation8 + $0x5c] sm:$0xf]
    %v1443 = vld [vmem:[#allocation8 + $0x60] sm:$0xf]
    %v1444 = vld [vmem:[#allocation8 + $0x64] sm:$0xf]
    %v1445 = vld [vmem:[#allocation8 + $0x68] sm:$0xf]
    %v1446 = vld [vmem:[#allocation8 + $0x6c] sm:$0xf]
    %v1447 = vld [vmem:[#allocation8 + $0x70] sm:$0xf]
    %v1448 = vld [vmem:[#allocation8 + $0x74] sm:$0xf]
    %v1449 = vld [vmem:[#allocation8 + $0x78] sm:$0xf]
    %v1450 = vld [vmem:[#allocation8 + $0x7c] sm:$0xf]
    %v1451 = vld [vmem:[#allocation8 + $0x80] sm:$0xf]
    %v1452 = vld [vmem:[#allocation8 + $0x84] sm:$0xf]
    %v1453 = vld [vmem:[#allocation8 + $0x88] sm:$0xf]
    %v1454 = vld [vmem:[#allocation8 + $0x8c] sm:$0xf]
    %v1455 = vld [vmem:[#allocation8 + $0x90] sm:$0xf]
    %v1456 = vld [vmem:[#allocation8 + $0x94] sm:$0xf]
    %v1457 = vld [vmem:[#allocation8 + $0x98] sm:$0xf]
    %v1458 = vld [vmem:[#allocation8 + $0x9c] sm:$0xf]
    %v1459 = vld [vmem:[#allocation8 + $0xa0] sm:$0xf]
    %v1460 = vld [vmem:[#allocation8 + $0xa4] sm:$0xf]
    %v1461 = vld [vmem:[#allocation8 + $0xa8] sm:$0xf]
    %v1462 = vld [vmem:[#allocation8 + $0xac] sm:$0xf]
    %v1463 = vld [vmem:[#allocation8 + $0xb0] sm:$0xf]
    %v1464 = vld [vmem:[#allocation8 + $0xb4] sm:$0xf]
    %v1465 = vld [vmem:[#allocation8 + $0xb8] sm:$0xf]
    %v1466 = vld [vmem:[#allocation8 + $0xbc] sm:$0xf]
    %v1467 = vld [vmem:[#allocation8 + $0xc0] sm:$0xf]
    %v1468 = vld [vmem:[#allocation8 + $0xc4] sm:$0xf]
    %v1469 = vld [vmem:[#allocation8 + $0xc8] sm:$0xf]
    %v1470 = vld [vmem:[#allocation8 + $0xcc] sm:$0xf]
    %v1471 = vld [vmem:[#allocation8 + $0xd0] sm:$0xf]
    %v1472 = vld [vmem:[#allocation8 + $0xd4] sm:$0xf]
    %v1473 = vld [vmem:[#allocation8 + $0xd8] sm:$0xf]
    %v1474 = vld [vmem:[#allocation8 + $0xdc] sm:$0xf]
    %v1475 = vld [vmem:[#allocation8 + $0xe0] sm:$0xf]
    %v1476 = vld [vmem:[#allocation8 + $0xe4] sm:$0xf]
    %v1477 = vld [vmem:[#allocation8 + $0xe8] sm:$0xf]
    %v1478 = vld [vmem:[#allocation8 + $0xec] sm:$0xf]
    %v1479 = vld [vmem:[#allocation8 + $0xf0] sm:$0xf]
    %v1480 = vld [vmem:[#allocation8 + $0xf4] sm:$0xf]
    %v1481 = vld [vmem:[#allocation8 + $0xf8] sm:$0xf]
    %v1482 = vld [vmem:[#allocation8 + $0xfc] sm:$0xf]
    %v1483 = vld [vmem:[%s8] sm:$0x1]
    %v1485 = vlaneseq
    %v1486 = vshrl.u32 %v1485, 7
    %v1487 = vsub.s32 0, %v1486
    %v1488 = vrot.slane %v1483, %v1487
    %v1554 = vunpack.c.l.b16 %v1419
    %v1555 = vunpack.c.l.b16 %v1420
    %v1556 = vunpack.c.l.b16 %v1421
    %v1557 = vunpack.c.l.b16 %v1422
    %v1558 = vunpack.c.l.b16 %v1423
    %v1559 = vunpack.c.l.b16 %v1424
    %v1560 = vunpack.c.l.b16 %v1425
    %v1561 = vunpack.c.l.b16 %v1426
    %v1562 = vunpack.c.l.b16 %v1427
    %v1563 = vunpack.c.l.b16 %v1428
    %v1564 = vunpack.c.l.b16 %v1429
    %v1565 = vunpack.c.l.b16 %v1430
    %v1566 = vunpack.c.l.b16 %v1431
    %v1567 = vunpack.c.l.b16 %v1432
    %v1568 = vunpack.c.l.b16 %v1433
    %v1569 = vunpack.c.l.b16 %v1434
    %v1570 = vunpack.c.l.b16 %v1435
    %v1571 = vunpack.c.l.b16 %v1436
    %v1572 = vunpack.c.l.b16 %v1437
    %v1573 = vunpack.c.l.b16 %v1438
    %v1574 = vunpack.c.l.b16 %v1439
    %v1575 = vunpack.c.l.b16 %v1440
    %v1576 = vunpack.c.l.b16 %v1441
    %v1577 = vunpack.c.l.b16 %v1442
    %v1578 = vunpack.c.l.b16 %v1443
    %v1579 = vunpack.c.l.b16 %v1444
    %v1580 = vunpack.c.l.b16 %v1445
    %v1581 = vunpack.c.l.b16 %v1446
    %v1582 = vunpack.c.l.b16 %v1447
    %v1583 = vunpack.c.l.b16 %v1448
    %v1584 = vunpack.c.l.b16 %v1449
    %v1585 = vunpack.c.l.b16 %v1450
    %v1586 = vunpack.c.l.b16 %v1451
    %v1587 = vunpack.c.l.b16 %v1452
    %v1588 = vunpack.c.l.b16 %v1453
    %v1589 = vunpack.c.l.b16 %v1454
    %v1590 = vunpack.c.l.b16 %v1455
    %v1591 = vunpack.c.l.b16 %v1456
    %v1592 = vunpack.c.l.b16 %v1457
    %v1593 = vunpack.c.l.b16 %v1458
    %v1594 = vunpack.c.l.b16 %v1459
    %v1595 = vunpack.c.l.b16 %v1460
    %v1596 = vunpack.c.l.b16 %v1461
    %v1597 = vunpack.c.l.b16 %v1462
    %v1598 = vunpack.c.l.b16 %v1463
    %v1599 = vunpack.c.l.b16 %v1464
    %v1600 = vunpack.c.l.b16 %v1465
    %v1601 = vunpack.c.l.b16 %v1466
    %v1602 = vunpack.c.l.b16 %v1467
    %v1603 = vunpack.c.l.b16 %v1468
    %v1604 = vunpack.c.l.b16 %v1469
    %v1605 = vunpack.c.l.b16 %v1470
    %v1606 = vunpack.c.l.b16 %v1471
    %v1607 = vunpack.c.l.b16 %v1472
    %v1608 = vunpack.c.l.b16 %v1473
    %v1609 = vunpack.c.l.b16 %v1474
    %v1610 = vunpack.c.l.b16 %v1475
    %v1611 = vunpack.c.l.b16 %v1476
    %v1612 = vunpack.c.l.b16 %v1477
    %v1613 = vunpack.c.l.b16 %v1478
    %v1614 = vunpack.c.l.b16 %v1479
    %v1615 = vunpack.c.l.b16 %v1480
    %v1616 = vunpack.c.l.b16 %v1481
    %v1617 = vunpack.c.l.b16 %v1482
    %v1618 = vpack.c.b16 %v1555, %v1554
    %v1619 = vpack.c.b16 %v1557, %v1556
    %v1620 = vpack.c.b16 %v1559, %v1558
    %v1621 = vpack.c.b16 %v1561, %v1560
    %v1622 = vpack.c.b16 %v1563, %v1562
    %v1623 = vpack.c.b16 %v1565, %v1564
    %v1624 = vpack.c.b16 %v1567, %v1566
    %v1625 = vpack.c.b16 %v1569, %v1568
    %v1626 = vpack.c.b16 %v1571, %v1570
    %v1627 = vpack.c.b16 %v1573, %v1572
    %v1628 = vpack.c.b16 %v1575, %v1574
    %v1629 = vpack.c.b16 %v1577, %v1576
    %v1630 = vpack.c.b16 %v1579, %v1578
    %v1631 = vpack.c.b16 %v1581, %v1580
    %v1632 = vpack.c.b16 %v1583, %v1582
    %v1633 = vpack.c.b16 %v1585, %v1584
    %v1634 = vpack.c.b16 %v1587, %v1586
    %v1635 = vpack.c.b16 %v1589, %v1588
    %v1636 = vpack.c.b16 %v1591, %v1590
    %v1637 = vpack.c.b16 %v1593, %v1592
    %v1638 = vpack.c.b16 %v1595, %v1594
    %v1639 = vpack.c.b16 %v1597, %v1596
    %v1640 = vpack.c.b16 %v1599, %v1598
    %v1641 = vpack.c.b16 %v1601, %v1600
    %v1642 = vpack.c.b16 %v1603, %v1602
    %v1643 = vpack.c.b16 %v1605, %v1604
    %v1644 = vpack.c.b16 %v1607, %v1606
    %v1645 = vpack.c.b16 %v1609, %v1608
    %v1646 = vpack.c.b16 %v1611, %v1610
    %v1647 = vpack.c.b16 %v1613, %v1612
    %v1648 = vpack.c.b16 %v1615, %v1614
    %v1649 = vpack.c.b16 %v1617, %v1616
    %1682 = vmatprep.subr.bf16.mxu0 0
    %1683 = vmatpush1.bf16.msra.mxu0 %v1618
    %1684 = vmatprep.subr.bf16.mxu0 0
    %1685 = vmatpush1.bf16.msra.mxu0 %v1619
    %1686 = vmatprep.subr.bf16.mxu0 0
    %1687 = vmatpush1.bf16.msra.mxu0 %v1620
    %1688 = vmatprep.subr.bf16.mxu0 0
    %1689 = vmatpush1.bf16.msra.mxu0 %v1621
    %1690 = vmatprep.subr.bf16.mxu0 0
    %1691 = vmatpush1.bf16.msra.mxu0 %v1622
    %1692 = vmatprep.subr.bf16.mxu0 0
    %1693 = vmatpush1.bf16.msra.mxu0 %v1623
    %1694 = vmatprep.subr.bf16.mxu0 0
    %1695 = vmatpush1.bf16.msra.mxu0 %v1624
    %1696 = vmatprep.subr.bf16.mxu0 0
    %1697 = vmatpush1.bf16.msra.mxu0 %v1625
    %1698 = vmatprep.subr.bf16.mxu0 0
    %1699 = vmatpush1.bf16.msra.mxu0 %v1626
    %1700 = vmatprep.subr.bf16.mxu0 0
    %1701 = vmatpush1.bf16.msra.mxu0 %v1627
    %1702 = vmatprep.subr.bf16.mxu0 0
    %1703 = vmatpush1.bf16.msra.mxu0 %v1628
    %1704 = vmatprep.subr.bf16.mxu0 0
    %1705 = vmatpush1.bf16.msra.mxu0 %v1629
    %1706 = vmatprep.subr.bf16.mxu0 0
    %1707 = vmatpush1.bf16.msra.mxu0 %v1630
    %1708 = vmatprep.subr.bf16.mxu0 0
    %1709 = vmatpush1.bf16.msra.mxu0 %v1631
    %1710 = vmatprep.subr.bf16.mxu0 0
    %1711 = vmatpush1.bf16.msra.mxu0 %v1632
    %1712 = vmatprep.subr.bf16.mxu0 0
    %1713 = vmatpush1.bf16.msra.mxu0 %v1633
    %1714 = vmatprep.mubr.bf16.mxu0 %v1416
    %1715 = vmatmul.mubr.bf16.gmra.mrb[0].mxu0 %v1415
    %v1716 = vpop.f32.mrb[0].mxu0
    %v1717 = vadd.f32 %v1488, %v1716
    %v1718 = vpop.f32.mrb[0].mxu0
    %v1719 = vpop.f32.mrb[0].mxu0
    %v1720 = vpop.f32.mrb[0].mxu0
    %1721 = vdwg.mxu0
    %1722 = vmatprep.subr.bf16.mxu0 0
    %1723 = vmatpush1.bf16.msra.mxu0 %v1634
    %1724 = vmatprep.subr.bf16.mxu0 0
    %1725 = vmatpush1.bf16.msra.mxu0 %v1635
    %1726 = vmatprep.subr.bf16.mxu0 0
    %1727 = vmatpush1.bf16.msra.mxu0 %v1636
    %1728 = vmatprep.subr.bf16.mxu0 0
    %1729 = vmatpush1.bf16.msra.mxu0 %v1637
    %1730 = vmatprep.subr.bf16.mxu0 0
    %1731 = vmatpush1.bf16.msra.mxu0 %v1638
    %1732 = vmatprep.subr.bf16.mxu0 0
    %1733 = vmatpush1.bf16.msra.mxu0 %v1639
    %1734 = vmatprep.subr.bf16.mxu0 0
    %1735 = vmatpush1.bf16.msra.mxu0 %v1640
    %1736 = vmatprep.subr.bf16.mxu0 0
    %1737 = vmatpush1.bf16.msra.mxu0 %v1641
    %1738 = vmatprep.subr.bf16.mxu0 0
    %1739 = vmatpush1.bf16.msra.mxu0 %v1642
    %1740 = vmatprep.subr.bf16.mxu0 0
    %1741 = vmatpush1.bf16.msra.mxu0 %v1643
    %1742 = vmatprep.subr.bf16.mxu0 0
    %1743 = vmatpush1.bf16.msra.mxu0 %v1644
    %1744 = vmatprep.subr.bf16.mxu0 0
    %1745 = vmatpush1.bf16.msra.mxu0 %v1645
    %1746 = vmatprep.subr.bf16.mxu0 0
    %1747 = vmatpush1.bf16.msra.mxu0 %v1646
    %1748 = vmatprep.subr.bf16.mxu0 0
    %1749 = vmatpush1.bf16.msra.mxu0 %v1647
    %1750 = vmatprep.subr.bf16.mxu0 0
    %1751 = vmatpush1.bf16.msra.mxu0 %v1648
    %1752 = vmatprep.subr.bf16.mxu0 0
    %1753 = vmatpush1.bf16.msra.mxu0 %v1649
    %1754 = vmatprep.mubr.bf16.mxu0 %v1418
    %1755 = vmatmul.mubr.bf16.gmra.mrb[0].mxu0 %v1417
    %v1756 = vpop.f32.mrb[0].mxu0
    %v1757 = vadd.f32 %v1717, %v1756
    %v1758 = vpop.f32.mrb[0].mxu0
    %v1759 = vpop.f32.mrb[0].mxu0
    %v1760 = vpop.f32.mrb[0].mxu0
    %1761 = vdwg.mxu0
    %1762 = vst [vmem:[#allocation10] sm:$0xff] %v1757
    // Predicated region
    $region54: #{tpu_custom_call.1} parent=1 // pred_check
      _
    $region55: #{tpu_custom_call.1} parent=1 // pred_check_branch
      %1764 = sbr.rel (0) target = $region57
    $region56: #{tpu_custom_call.1} parent=1 // pred_region
      %s1766 = ssub.s32 128, 128
      %1767 = vsyncadd [#allocation4], %s1766
      %s1769 = sshll.u32 [#allocation10], 4
      %s1770 = int_to_ptr.vmem [resolvable:$true] %s1769
      %1772 = dma.vmem_to_hbm [thread:$0]  %s1770, 128, %s9, [#allocation4]
    $region57: #{tpu_custom_call.1} parent=1 // pred_fallthru
      _
    // Predicated region
    $region58: #{tpu_custom_call.1} parent=1 // pred_check
      _
    $region59: #{tpu_custom_call.1} parent=1 // pred_check_branch
      %1774 = sbr.rel (0) target = $region61
    $region60: #{tpu_custom_call.1} parent=1 // pred_region
      %1775 = dma.done [#allocation4], 128
    $region61: #{tpu_custom_call.1} parent=1 // pred_fallthru
      _
    %1776 = vsyncpa [#allocation3], 1
    %1777 = vsyncpa [#allocation6], 1
    %1778 = vsyncpa [#allocation9], 1
    %1779 = vsyncpa [#allocation4], 1

</llo_original>
